<compile_context>
chip_gen: v5e
topology: v5e:2x2
jax: 0.10.0
libtpu: 0.0.40
codegen_flags: <defaults>
</compile_context>

<pallas_src>
import math
import jax
import jax.numpy as jnp
from jax import lax
from jax.experimental import pallas as pl
from jax.experimental.pallas import tpu as pltpu

# std of a standard normal truncated to [-2, 2]  (== scipy truncnorm.std(a=-2, b=2))
_TRUNC_STD = 0.87962566103423978


def _round_up(x, m):
    return ((x + m - 1) // m) * m


def _ceil_div(a, b):
    return (a + b - 1) // b


def _sublane_multiple(dtype):
    # sublane packing: f32 -> 8, bf16 -> 16, int8/fp8 -> 32
    return max(8, 32 // jnp.dtype(dtype).itemsize)


def _vmem_budget_bytes():
    """Scoped-VMEM budget: fits v7x's 64 MiB physical VMEM, uses more on v5e/v6e."""
    try:
        cap = int(pltpu.get_tpu_info().vmem_capacity_bytes)
    except Exception:
        cap = 64 << 20  # conservative default (v7x per-core VMEM)
    return max(32 << 20, min(cap - (16 << 20), 100 << 20))


def _pick_tile(tile_n, n_total, dim, out_pad, s_itemsize, w_itemsize, mult, budget):
    """Largest row-tile that (a) fits the VMEM budget with double-buffered streams
    and worst-case double-buffered weights, (b) leaves >= ~4 grid blocks so the
    parallel axis can be split across v7x's two TensorCores."""
    weight_bytes = 2 * ((3 * dim * dim + dim * out_pad) * w_itemsize
                        + (3 * dim + out_pad) * 4)
    per_row = (2 * dim * s_itemsize          # s tile, double-buffered
               + 2 * out_pad * s_itemsize    # output tile, double-buffered
               + 4 * dim * 4)                # f32 intermediates / spill headroom
    avail = budget - weight_bytes - (4 << 20)
    cap_rows = mult
    if avail > per_row * mult:
        cap_rows = max(mult, (avail // per_row) // mult * mult)
    tile = min(_round_up(tile_n, mult), cap_rows)
    tile = min(tile, _round_up(_ceil_div(n_total, 4), mult))
    return max(mult, tile)


def _rotation_vf_kernel(s_ref, w1_ref, b1_ref, w2_ref, b2_ref,
                        w3_ref, b3_ref, wf_ref, bf_ref, o_ref):
    # s_ref : [tile, dim]        streamed row-tile of the single representation
    # w*_ref: [dim, dim]         resident, matmul dtype (bf16 fast path / f32)
    # b*_ref: [1, dim]           resident, f32
    # wf_ref: [dim, out_pad]     resident (zero-padded to 128 lanes)
    # bf_ref: [1, out_pad]       resident, f32
    # o_ref : [tile, out_pad]    lane-dense output block
    wdt = w1_ref.dtype

    h = jnp.dot(s_ref[...].astype(wdt), w1_ref[...],
                preferred_element_type=jnp.float32) + b1_ref[...]
    h = jnp.maximum(h, 0.0)

    h = jnp.dot(h.astype(wdt), w2_ref[...],
                preferred_element_type=jnp.float32) + b2_ref[...]
    h = jnp.maximum(h, 0.0)

    h = jnp.dot(h.astype(wdt), w3_ref[...],
                preferred_element_type=jnp.float32) + b3_ref[...]
    # Residual: re-read the resident s tile (free) instead of keeping an f32 copy live.
    h = h + s_ref[...].astype(jnp.float32)

    o = jnp.dot(h.astype(wf_ref.dtype), wf_ref[...],
                preferred_element_type=jnp.float32) + bf_ref[...]
    o_ref[...] = o.astype(o_ref.dtype)


def rotation_vf_forward(s, params, *, tile_n=1024, matmul_dtype=jnp.bfloat16):
    """s: [*, N_res, dim]; params = (w1,b1,w2,b2,w3,b3,wf,bf) with w_i: [dim, dim],
    wf: [dim, 6]; returns [*, N_res, 6].

    matmul_dtype: dtype of MXU operands (accumulation is always f32). bf16 is the
    fast path on all TPU generations; pass jnp.float32 for exact module numerics.
    """
    # TODO(synk): optional int8 (v5e/v6e) / fp8-e4m3 (v7x) weight quantization path.
    w1, b1, w2, b2, w3, b3, wf, bf = params
    *batch, dim = s.shape
    out_dim = wf.shape[1]
    n_total = 1
    for d in batch:
        n_total *= d

    wdt = jnp.dtype(matmul_dtype if matmul_dtype is not None else w1.dtype)
    s_itemsize = jnp.dtype(s.dtype).itemsize

    # Lane-dense output: pad the 6-wide projection to a full 128-lane block so the
    # writeback uses unmasked stores; the wrapper slices back to out_dim.
    out_pad = _round_up(max(out_dim, 128), 128)

    s2d = s.reshape(n_total, dim)
    w1c, w2c, w3c = (w.astype(wdt) for w in (w1, w2, w3))
    wfp = jnp.zeros((dim, out_pad), wdt).at[:, :out_dim].set(wf.astype(wdt))
    b1r = b1.reshape(1, dim).astype(jnp.float32)
    b2r = b2.reshape(1, dim).astype(jnp.float32)
    b3r = b3.reshape(1, dim).astype(jnp.float32)
    bfp = jnp.zeros((1, out_pad), jnp.float32).at[:, :out_dim].set(
        bf.reshape(1, out_dim).astype(jnp.float32))

    mult = _sublane_multiple(s.dtype)
    budget = _vmem_budget_bytes()
    tile = _pick_tile(tile_n, n_total, dim, out_pad, s_itemsize,
                      wdt.itemsize, mult, budget)
    grid = (_ceil_div(n_total, tile),)

    cost = pl.CostEstimate(
        flops=2 * n_total * dim * (3 * dim + out_pad),
        transcendentals=0,
        bytes_accessed=(n_total * dim * s_itemsize
                        + n_total * out_pad * s_itemsize
                        + (3 * dim * dim + dim * out_pad) * wdt.itemsize),
    )

    resident = lambda i: (0, 0)

    def build(weight_mode):
        def wspec(shape):
            if weight_mode is None:
                return pl.BlockSpec(shape, resident)
            return pl.BlockSpec(shape, resident, pipeline_mode=weight_mode)

        return pl.pallas_call(
            _rotation_vf_kernel,
            out_shape=jax.ShapeDtypeStruct((n_total, out_pad), s.dtype),
            grid_spec=pltpu.PrefetchScalarGridSpec(
                num_scalar_prefetch=0,
                grid=grid,
                in_specs=[
                    pl.BlockSpec((tile, dim), lambda i: (i, 0)),   # s (streamed)
                    wspec((dim, dim)), wspec((1, dim)),            # w1, b1 (resident)
                    wspec((dim, dim)), wspec((1, dim)),            # w2, b2 (resident)
                    wspec((dim, dim)), wspec((1, dim)),            # w3, b3 (resident)
                    wspec((dim, out_pad)), wspec((1, out_pad)),    # wf, bf (resident)
                ],
                out_specs=pl.BlockSpec((tile, out_pad), lambda i: (i, 0)),
            ),
            compiler_params=pltpu.CompilerParams(
                dimension_semantics=("parallel",),
                vmem_limit_bytes=int(budget),
            ),
            cost_estimate=cost,
        )

    args = (s2d, w1c, b1r, w2c, b2r, w3c, b3r, wfp, bfp)
    try:
        # Resident weights never change across the grid -> single-buffer them.
        out = build(pl.Buffered(buffer_count=1))(*args)
    except Exception:
        # Portability guard: fall back to default (double-buffered) pipelining.
        out = build(None)(*args)

    return out[:, :out_dim].reshape(*batch, out_dim)


def rotation_vf_reference(s, params, matmul_dtype=None):
    """Pure-JAX reference matching the PyTorch forward.  If matmul_dtype is given,
    matmul operands are rounded to that dtype (accumulation stays f32), mirroring
    the kernel's fast path for tight comparisons."""
    w1, b1, w2, b2, w3, b3, wf, bf = params
    cast = (lambda a: a) if matmul_dtype is None else (lambda a: a.astype(matmul_dtype))

    def lin(h, w, b):
        return (jnp.dot(cast(h), cast(w), preferred_element_type=jnp.float32,
                        precision=lax.Precision.HIGHEST)
                + b.astype(jnp.float32))

    h = jnp.maximum(lin(s, w1, b1), 0.0)
    h = jnp.maximum(lin(h, w2, b2), 0.0)
    h = lin(h, w3, b3) + s.astype(jnp.float32)
    return lin(h, wf, bf).astype(s.dtype)


def init_rotation_vf_params(key, dim, dtype=jnp.float32):
    """Mirrors the module init: linear_1/2 'relu' (He trunc-normal), linear_3
    'default' (LeCun trunc-normal), final_linear 'final' (zeros); biases zero.
    Weights are stored as [in_dim, out_dim] (transpose of nn.Linear.weight)."""
    k1, k2, k3 = jax.random.split(key, 3)

    def trunc_normal(k, fan_in, fan_out, scale):
        std = math.sqrt(scale / max(1, fan_in)) / _TRUNC_STD
        w = std * jax.random.truncated_normal(k, -2.0, 2.0, (fan_in, fan_out))
        return w.astype(dtype)

    w1 = trunc_normal(k1, dim, dim, 2.0)    # 'relu' -> He
    w2 = trunc_normal(k2, dim, dim, 2.0)    # 'relu' -> He
    w3 = trunc_normal(k3, dim, dim, 1.0)    # 'default' -> LeCun
    wf = jnp.zeros((dim, 6), dtype=dtype)   # 'final' -> zeros
    zeros_d = jnp.zeros((dim,), dtype=dtype)
    return (w1, zeros_d, w2, zeros_d, w3, zeros_d, wf, jnp.zeros((6,), dtype=dtype))


if __name__ == "__main__":
    key = jax.random.PRNGKey(0)
    k_s, k_p, k_w, k_b, k_s2 = jax.random.split(key, 5)

    batch, n_res, dim = 2, 8, 32
    s = jax.random.normal(k_s, (batch, n_res, dim), dtype=jnp.float32)

    # 1) Faithful module init ('final' => zero final weight => all-zero output),
    #    run through the default bf16 fast path.
    params = init_rotation_vf_params(k_p, dim)
    out = jax.block_until_ready(rotation_vf_forward(s, params))
    assert out.shape == (batch, n_res, 6)
    assert jnp.allclose(out, jnp.zeros_like(out), atol=1e-6), "faithful-init check failed"

    # Non-zero final weights/bias to exercise every matmul + relu + residual path.
    w1, b1, w2, b2, w3, b3, _, _ = params
    wf = jax.random.normal(k_w, (dim, 6), dtype=jnp.float32) / math.sqrt(dim)
    bf = jax.random.normal(k_b, (6,), dtype=jnp.float32)
    params2 = (w1, b1, w2, b2, w3, b3, wf, bf)

    # 2) Exact module semantics: f32 matmul path vs. pure-f32 reference.
    out_f32 = jax.block_until_ready(
        rotation_vf_forward(s, params2, matmul_dtype=jnp.float32))
    ref_f32 = rotation_vf_reference(s, params2)
    assert jnp.allclose(out_f32, ref_f32, atol=1e-4, rtol=1e-4), "f32-path check failed"

    # 3) Default fast path: bf16 MXU operands, f32 accumulation.
    out_bf = jax.block_until_ready(rotation_vf_forward(s, params2))
    ref_bf = rotation_vf_reference(s, params2, matmul_dtype=jnp.bfloat16)
    assert jnp.allclose(out_bf, ref_bf, atol=2e-2, rtol=2e-2), "bf16-path check failed"
    assert jnp.allclose(out_bf, ref_f32, atol=2e-1, rtol=2e-1), "bf16-vs-f32 drift too large"

    # 4) Ragged row count + multi-block grid (no host-side padding anywhere).
    s3 = jax.random.normal(k_s2, (3, 7, dim), dtype=jnp.float32)  # N = 21 rows
    out3 = jax.block_until_ready(
        rotation_vf_forward(s3, params2, tile_n=8, matmul_dtype=jnp.float32))
    ref3 = rotation_vf_reference(s3, params2)
    assert out3.shape == (3, 7, 6)
    assert jnp.allclose(out3, ref3, atol=1e-4, rtol=1e-4), "ragged-grid check failed"

    print("KERNEL_OK")
</pallas_src>

<mosaic_0001>
module attributes {stable_mosaic.version = 11 : i64} {
  func.func @_rotation_vf_kernel(%arg0: i32, %arg1: memref<8x32xf32, #tpu.memory_space<vmem>>, %arg2: memref<32x32xbf16, #tpu.memory_space<vmem>>, %arg3: memref<1x32xf32, #tpu.memory_space<vmem>>, %arg4: memref<32x32xbf16, #tpu.memory_space<vmem>>, %arg5: memref<1x32xf32, #tpu.memory_space<vmem>>, %arg6: memref<32x32xbf16, #tpu.memory_space<vmem>>, %arg7: memref<1x32xf32, #tpu.memory_space<vmem>>, %arg8: memref<32x128xbf16, #tpu.memory_space<vmem>>, %arg9: memref<1x128xf32, #tpu.memory_space<vmem>>, %arg10: memref<8x128xf32, #tpu.memory_space<vmem>>) attributes {dimension_semantics = [#tpu.dimension_semantics<parallel>], iteration_bounds = array<i64: 2>, scalar_prefetch = 0 : i64, scratch_operands = 0 : i64, tpu.core_type = #tpu.core_type<tc>, window_params = [{transform_indices = @transform_0, window_bounds = array<i64: 8, 32>}, {pipeline_mode = #tpu.pipeline_mode<synchronous>, transform_indices = @transform_1, window_bounds = array<i64: 32, 32>}, {pipeline_mode = #tpu.pipeline_mode<synchronous>, transform_indices = @transform_2, window_bounds = array<i64: 1, 32>}, {pipeline_mode = #tpu.pipeline_mode<synchronous>, transform_indices = @transform_3, window_bounds = array<i64: 32, 32>}, {pipeline_mode = #tpu.pipeline_mode<synchronous>, transform_indices = @transform_4, window_bounds = array<i64: 1, 32>}, {pipeline_mode = #tpu.pipeline_mode<synchronous>, transform_indices = @transform_5, window_bounds = array<i64: 32, 32>}, {pipeline_mode = #tpu.pipeline_mode<synchronous>, transform_indices = @transform_6, window_bounds = array<i64: 1, 32>}, {pipeline_mode = #tpu.pipeline_mode<synchronous>, transform_indices = @transform_7, window_bounds = array<i64: 32, 128>}, {pipeline_mode = #tpu.pipeline_mode<synchronous>, transform_indices = @transform_8, window_bounds = array<i64: 1, 128>}, {transform_indices = @transform_9, window_bounds = array<i64: 8, 128>}]} {
    %c0 = arith.constant 0 : index
    %c0_0 = arith.constant 0 : index
    %0 = vector.load %arg1[%c0, %c0_0] : memref<8x32xf32, #tpu.memory_space<vmem>>, vector<8x32xf32>
    %1 = arith.truncf %0 : vector<8x32xf32> to vector<8x32xbf16>
    %c0_1 = arith.constant 0 : index
    %c0_2 = arith.constant 0 : index
    %2 = vector.load %arg2[%c0_1, %c0_2] : memref<32x32xbf16, #tpu.memory_space<vmem>>, vector<32x32xbf16>
    %cst = arith.constant dense<0.000000e+00> : vector<8x32xf32>
    %3 = tpu.matmul %1, %2, %cst {dimension_numbers = #tpu.dot_dimension_numbers<[1], [0], [0], [1], [0, 0, 1, 1], [], []>} : vector<8x32xbf16>, vector<32x32xbf16>, vector<8x32xf32> -> vector<8x32xf32>
    %c0_3 = arith.constant 0 : index
    %c0_4 = arith.constant 0 : index
    %4 = vector.load %arg3[%c0_3, %c0_4] : memref<1x32xf32, #tpu.memory_space<vmem>>, vector<1x32xf32>
    %5 = vector.broadcast %4 : vector<1x32xf32> to vector<8x32xf32>
    %6 = arith.addf %3, %5 : vector<8x32xf32>
    %cst_5 = arith.constant 0.000000e+00 : f32
    %7 = vector.broadcast %cst_5 : f32 to vector<8x32xf32>
    %8 = arith.maximumf %6, %7 : vector<8x32xf32>
    %9 = arith.truncf %8 : vector<8x32xf32> to vector<8x32xbf16>
    %c0_6 = arith.constant 0 : index
    %c0_7 = arith.constant 0 : index
    %10 = vector.load %arg4[%c0_6, %c0_7] : memref<32x32xbf16, #tpu.memory_space<vmem>>, vector<32x32xbf16>
    %cst_8 = arith.constant dense<0.000000e+00> : vector<8x32xf32>
    %11 = tpu.matmul %9, %10, %cst_8 {dimension_numbers = #tpu.dot_dimension_numbers<[1], [0], [0], [1], [0, 0, 1, 1], [], []>} : vector<8x32xbf16>, vector<32x32xbf16>, vector<8x32xf32> -> vector<8x32xf32>
    %c0_9 = arith.constant 0 : index
    %c0_10 = arith.constant 0 : index
    %12 = vector.load %arg5[%c0_9, %c0_10] : memref<1x32xf32, #tpu.memory_space<vmem>>, vector<1x32xf32>
    %13 = vector.broadcast %12 : vector<1x32xf32> to vector<8x32xf32>
    %14 = arith.addf %11, %13 : vector<8x32xf32>
    %cst_11 = arith.constant 0.000000e+00 : f32
    %15 = vector.broadcast %cst_11 : f32 to vector<8x32xf32>
    %16 = arith.maximumf %14, %15 : vector<8x32xf32>
    %17 = arith.truncf %16 : vector<8x32xf32> to vector<8x32xbf16>
    %c0_12 = arith.constant 0 : index
    %c0_13 = arith.constant 0 : index
    %18 = vector.load %arg6[%c0_12, %c0_13] : memref<32x32xbf16, #tpu.memory_space<vmem>>, vector<32x32xbf16>
    %cst_14 = arith.constant dense<0.000000e+00> : vector<8x32xf32>
    %19 = tpu.matmul %17, %18, %cst_14 {dimension_numbers = #tpu.dot_dimension_numbers<[1], [0], [0], [1], [0, 0, 1, 1], [], []>} : vector<8x32xbf16>, vector<32x32xbf16>, vector<8x32xf32> -> vector<8x32xf32>
    %c0_15 = arith.constant 0 : index
    %c0_16 = arith.constant 0 : index
    %20 = vector.load %arg7[%c0_15, %c0_16] : memref<1x32xf32, #tpu.memory_space<vmem>>, vector<1x32xf32>
    %21 = vector.broadcast %20 : vector<1x32xf32> to vector<8x32xf32>
    %22 = arith.addf %19, %21 : vector<8x32xf32>
    %c0_17 = arith.constant 0 : index
    %c0_18 = arith.constant 0 : index
    %23 = vector.load %arg1[%c0_17, %c0_18] : memref<8x32xf32, #tpu.memory_space<vmem>>, vector<8x32xf32>
    %24 = arith.addf %22, %23 : vector<8x32xf32>
    %25 = arith.truncf %24 : vector<8x32xf32> to vector<8x32xbf16>
    %c0_19 = arith.constant 0 : index
    %c0_20 = arith.constant 0 : index
    %26 = vector.load %arg8[%c0_19, %c0_20] : memref<32x128xbf16, #tpu.memory_space<vmem>>, vector<32x128xbf16>
    %cst_21 = arith.constant dense<0.000000e+00> : vector<8x128xf32>
    %27 = tpu.matmul %25, %26, %cst_21 {dimension_numbers = #tpu.dot_dimension_numbers<[1], [0], [0], [1], [0, 0, 1, 1], [], []>} : vector<8x32xbf16>, vector<32x128xbf16>, vector<8x128xf32> -> vector<8x128xf32>
    %c0_22 = arith.constant 0 : index
    %c0_23 = arith.constant 0 : index
    %28 = vector.load %arg9[%c0_22, %c0_23] : memref<1x128xf32, #tpu.memory_space<vmem>>, vector<1x128xf32>
    %29 = vector.broadcast %28 : vector<1x128xf32> to vector<8x128xf32>
    %30 = arith.addf %27, %29 : vector<8x128xf32>
    %c0_24 = arith.constant 0 : index
    %c0_25 = arith.constant 0 : index
    %31 = vector.load %arg10[%c0_24, %c0_25] : memref<8x128xf32, #tpu.memory_space<vmem>>, vector<8x128xf32>
    tpu.vector_store %arg10[%c0_24, %c0_25], %30 {strides = array<i32>} : memref<8x128xf32, #tpu.memory_space<vmem>>, vector<8x128xf32>,
    return
  }
  func.func @transform_0(%arg0: i32) -> (i32, i32) {
    %c0_i32 = arith.constant 0 : i32
    %c0_i32_0 = arith.constant 0 : i32
    return %arg0, %c0_i32 : i32, i32
  }
  func.func @transform_1(%arg0: i32) -> (i32, i32) {
    %c0_i32 = arith.constant 0 : i32
    %c0_i32_0 = arith.constant 0 : i32
    %c0_i32_1 = arith.constant 0 : i32
    return %c0_i32, %c0_i32_0 : i32, i32
  }
  func.func @transform_2(%arg0: i32) -> (i32, i32) {
    %c0_i32 = arith.constant 0 : i32
    %c0_i32_0 = arith.constant 0 : i32
    %c0_i32_1 = arith.constant 0 : i32
    return %c0_i32, %c0_i32_0 : i32, i32
  }
  func.func @transform_3(%arg0: i32) -> (i32, i32) {
    %c0_i32 = arith.constant 0 : i32
    %c0_i32_0 = arith.constant 0 : i32
    %c0_i32_1 = arith.constant 0 : i32
    return %c0_i32, %c0_i32_0 : i32, i32
  }
  func.func @transform_4(%arg0: i32) -> (i32, i32) {
    %c0_i32 = arith.constant 0 : i32
    %c0_i32_0 = arith.constant 0 : i32
    %c0_i32_1 = arith.constant 0 : i32
    return %c0_i32, %c0_i32_0 : i32, i32
  }
  func.func @transform_5(%arg0: i32) -> (i32, i32) {
    %c0_i32 = arith.constant 0 : i32
    %c0_i32_0 = arith.constant 0 : i32
    %c0_i32_1 = arith.constant 0 : i32
    return %c0_i32, %c0_i32_0 : i32, i32
  }
  func.func @transform_6(%arg0: i32) -> (i32, i32) {
    %c0_i32 = arith.constant 0 : i32
    %c0_i32_0 = arith.constant 0 : i32
    %c0_i32_1 = arith.constant 0 : i32
    return %c0_i32, %c0_i32_0 : i32, i32
  }
  func.func @transform_7(%arg0: i32) -> (i32, i32) {
    %c0_i32 = arith.constant 0 : i32
    %c0_i32_0 = arith.constant 0 : i32
    %c0_i32_1 = arith.constant 0 : i32
    return %c0_i32, %c0_i32_0 : i32, i32
  }
  func.func @transform_8(%arg0: i32) -> (i32, i32) {
    %c0_i32 = arith.constant 0 : i32
    %c0_i32_0 = arith.constant 0 : i32
    %c0_i32_1 = arith.constant 0 : i32
    return %c0_i32, %c0_i32_0 : i32, i32
  }
  func.func @transform_9(%arg0: i32) -> (i32, i32) {
    %c0_i32 = arith.constant 0 : i32
    %c0_i32_0 = arith.constant 0 : i32
    return %arg0, %c0_i32 : i32, i32
  }
}

module attributes {stable_mosaic.version = 11 : i64} {
  func.func @_rotation_vf_kernel(%arg0: i32, %arg1: memref<8x32xf32, #tpu.memory_space<vmem>>, %arg2: memref<32x32xbf16, #tpu.memory_space<vmem>>, %arg3: memref<1x32xf32, #tpu.memory_space<vmem>>, %arg4: memref<32x32xbf16, #tpu.memory_space<vmem>>, %arg5: memref<1x32xf32, #tpu.memory_space<vmem>>, %arg6: memref<32x32xbf16, #tpu.memory_space<vmem>>, %arg7: memref<1x32xf32, #tpu.memory_space<vmem>>, %arg8: memref<32x128xbf16, #tpu.memory_space<vmem>>, %arg9: memref<1x128xf32, #tpu.memory_space<vmem>>, %arg10: memref<8x128xf32, #tpu.memory_space<vmem>>) attributes {dimension_semantics = [#tpu.dimension_semantics<parallel>], iteration_bounds = array<i64: 2>, scalar_prefetch = 0 : i64, scratch_operands = 0 : i64, tpu.core_type = #tpu.core_type<tc>, window_params = [{transform_indices = @transform_0, window_bounds = array<i64: 8, 32>}, {pipeline_mode = #tpu.pipeline_mode<synchronous>, transform_indices = @transform_1, window_bounds = array<i64: 32, 32>}, {pipeline_mode = #tpu.pipeline_mode<synchronous>, transform_indices = @transform_2, window_bounds = array<i64: 1, 32>}, {pipeline_mode = #tpu.pipeline_mode<synchronous>, transform_indices = @transform_3, window_bounds = array<i64: 32, 32>}, {pipeline_mode = #tpu.pipeline_mode<synchronous>, transform_indices = @transform_4, window_bounds = array<i64: 1, 32>}, {pipeline_mode = #tpu.pipeline_mode<synchronous>, transform_indices = @transform_5, window_bounds = array<i64: 32, 32>}, {pipeline_mode = #tpu.pipeline_mode<synchronous>, transform_indices = @transform_6, window_bounds = array<i64: 1, 32>}, {pipeline_mode = #tpu.pipeline_mode<synchronous>, transform_indices = @transform_7, window_bounds = array<i64: 32, 128>}, {pipeline_mode = #tpu.pipeline_mode<synchronous>, transform_indices = @transform_8, window_bounds = array<i64: 1, 128>}, {transform_indices = @transform_9, window_bounds = array<i64: 8, 128>}]} {
    %c0 = arith.constant 0 : index
    %c0_0 = arith.constant 0 : index
    %0 = vector.load %arg1[%c0, %c0_0] : memref<8x32xf32, #tpu.memory_space<vmem>>, vector<8x32xf32>
    %1 = arith.truncf %0 : vector<8x32xf32> to vector<8x32xbf16>
    %c0_1 = arith.constant 0 : index
    %c0_2 = arith.constant 0 : index
    %2 = vector.load %arg2[%c0_1, %c0_2] : memref<32x32xbf16, #tpu.memory_space<vmem>>, vector<32x32xbf16>
    %cst = arith.constant dense<0.000000e+00> : vector<8x32xf32>
    %3 = tpu.matmul %1, %2, %cst {dimension_numbers = #tpu.dot_dimension_numbers<[1], [0], [0], [1], [0, 0, 1, 1], [], []>} : vector<8x32xbf16>, vector<32x32xbf16>, vector<8x32xf32> -> vector<8x32xf32>
    %c0_3 = arith.constant 0 : index
    %c0_4 = arith.constant 0 : index
    %4 = vector.load %arg3[%c0_3, %c0_4] : memref<1x32xf32, #tpu.memory_space<vmem>>, vector<1x32xf32>
    %5 = vector.broadcast %4 : vector<1x32xf32> to vector<8x32xf32>
    %6 = arith.addf %3, %5 : vector<8x32xf32>
    %cst_5 = arith.constant 0.000000e+00 : f32
    %7 = vector.broadcast %cst_5 : f32 to vector<8x32xf32>
    %8 = arith.maximumf %6, %7 : vector<8x32xf32>
    %9 = arith.truncf %8 : vector<8x32xf32> to vector<8x32xbf16>
    %c0_6 = arith.constant 0 : index
    %c0_7 = arith.constant 0 : index
    %10 = vector.load %arg4[%c0_6, %c0_7] : memref<32x32xbf16, #tpu.memory_space<vmem>>, vector<32x32xbf16>
    %cst_8 = arith.constant dense<0.000000e+00> : vector<8x32xf32>
    %11 = tpu.matmul %9, %10, %cst_8 {dimension_numbers = #tpu.dot_dimension_numbers<[1], [0], [0], [1], [0, 0, 1, 1], [], []>} : vector<8x32xbf16>, vector<32x32xbf16>, vector<8x32xf32> -> vector<8x32xf32>
    %c0_9 = arith.constant 0 : index
    %c0_10 = arith.constant 0 : index
    %12 = vector.load %arg5[%c0_9, %c0_10] : memref<1x32xf32, #tpu.memory_space<vmem>>, vector<1x32xf32>
    %13 = vector.broadcast %12 : vector<1x32xf32> to vector<8x32xf32>
    %14 = arith.addf %11, %13 : vector<8x32xf32>
    %cst_11 = arith.constant 0.000000e+00 : f32
    %15 = vector.broadcast %cst_11 : f32 to vector<8x32xf32>
    %16 = arith.maximumf %14, %15 : vector<8x32xf32>
    %17 = arith.truncf %16 : vector<8x32xf32> to vector<8x32xbf16>
    %c0_12 = arith.constant 0 : index
    %c0_13 = arith.constant 0 : index
    %18 = vector.load %arg6[%c0_12, %c0_13] : memref<32x32xbf16, #tpu.memory_space<vmem>>, vector<32x32xbf16>
    %cst_14 = arith.constant dense<0.000000e+00> : vector<8x32xf32>
    %19 = tpu.matmul %17, %18, %cst_14 {dimension_numbers = #tpu.dot_dimension_numbers<[1], [0], [0], [1], [0, 0, 1, 1], [], []>} : vector<8x32xbf16>, vector<32x32xbf16>, vector<8x32xf32> -> vector<8x32xf32>
    %c0_15 = arith.constant 0 : index
    %c0_16 = arith.constant 0 : index
    %20 = vector.load %arg7[%c0_15, %c0_16] : memref<1x32xf32, #tpu.memory_space<vmem>>, vector<1x32xf32>
    %21 = vector.broadcast %20 : vector<1x32xf32> to vector<8x32xf32>
    %22 = arith.addf %19, %21 : vector<8x32xf32>
    %c0_17 = arith.constant 0 : index
    %c0_18 = arith.constant 0 : index
    %23 = vector.load %arg1[%c0_17, %c0_18] : memref<8x32xf32, #tpu.memory_space<vmem>>, vector<8x32xf32>
    %24 = arith.addf %22, %23 : vector<8x32xf32>
    %25 = arith.truncf %24 : vector<8x32xf32> to vector<8x32xbf16>
    %c0_19 = arith.constant 0 : index
    %c0_20 = arith.constant 0 : index
    %26 = vector.load %arg8[%c0_19, %c0_20] : memref<32x128xbf16, #tpu.memory_space<vmem>>, vector<32x128xbf16>
    %cst_21 = arith.constant dense<0.000000e+00> : vector<8x128xf32>
    %27 = tpu.matmul %25, %26, %cst_21 {dimension_numbers = #tpu.dot_dimension_numbers<[1], [0], [0], [1], [0, 0, 1, 1], [], []>} : vector<8x32xbf16>, vector<32x128xbf16>, vector<8x128xf32> -> vector<8x128xf32>
    %c0_22 = arith.constant 0 : index
    %c0_23 = arith.constant 0 : index
    %28 = vector.load %arg9[%c0_22, %c0_23] : memref<1x128xf32, #tpu.memory_space<vmem>>, vector<1x128xf32>
    %29 = vector.broadcast %28 : vector<1x128xf32> to vector<8x128xf32>
    %30 = arith.addf %27, %29 : vector<8x128xf32>
    %c0_24 = arith.constant 0 : index
    %c0_25 = arith.constant 0 : index
    %31 = vector.load %arg10[%c0_24, %c0_25] : memref<8x128xf32, #tpu.memory_space<vmem>>, vector<8x128xf32>
    tpu.vector_store %arg10[%c0_24, %c0_25], %30 {strides = array<i32>} : memref<8x128xf32, #tpu.memory_space<vmem>>, vector<8x128xf32>,
    return
  }
  func.func @transform_0(%arg0: i32) -> (i32, i32) {
    %c0_i32 = arith.constant 0 : i32
    %c0_i32_0 = arith.constant 0 : i32
    return %arg0, %c0_i32 : i32, i32
  }
  func.func @transform_1(%arg0: i32) -> (i32, i32) {
    %c0_i32 = arith.constant 0 : i32
    %c0_i32_0 = arith.constant 0 : i32
    %c0_i32_1 = arith.constant 0 : i32
    return %c0_i32, %c0_i32_0 : i32, i32
  }
  func.func @transform_2(%arg0: i32) -> (i32, i32) {
    %c0_i32 = arith.constant 0 : i32
    %c0_i32_0 = arith.constant 0 : i32
    %c0_i32_1 = arith.constant 0 : i32
    return %c0_i32, %c0_i32_0 : i32, i32
  }
  func.func @transform_3(%arg0: i32) -> (i32, i32) {
    %c0_i32 = arith.constant 0 : i32
    %c0_i32_0 = arith.constant 0 : i32
    %c0_i32_1 = arith.constant 0 : i32
    return %c0_i32, %c0_i32_0 : i32, i32
  }
  func.func @transform_4(%arg0: i32) -> (i32, i32) {
    %c0_i32 = arith.constant 0 : i32
    %c0_i32_0 = arith.constant 0 : i32
    %c0_i32_1 = arith.constant 0 : i32
    return %c0_i32, %c0_i32_0 : i32, i32
  }
  func.func @transform_5(%arg0: i32) -> (i32, i32) {
    %c0_i32 = arith.constant 0 : i32
    %c0_i32_0 = arith.constant 0 : i32
    %c0_i32_1 = arith.constant 0 : i32
    return %c0_i32, %c0_i32_0 : i32, i32
  }
  func.func @transform_6(%arg0: i32) -> (i32, i32) {
    %c0_i32 = arith.constant 0 : i32
    %c0_i32_0 = arith.constant 0 : i32
    %c0_i32_1 = arith.constant 0 : i32
    return %c0_i32, %c0_i32_0 : i32, i32
  }
  func.func @transform_7(%arg0: i32) -> (i32, i32) {
    %c0_i32 = arith.constant 0 : i32
    %c0_i32_0 = arith.constant 0 : i32
    %c0_i32_1 = arith.constant 0 : i32
    return %c0_i32, %c0_i32_0 : i32, i32
  }
  func.func @transform_8(%arg0: i32) -> (i32, i32) {
    %c0_i32 = arith.constant 0 : i32
    %c0_i32_0 = arith.constant 0 : i32
    %c0_i32_1 = arith.constant 0 : i32
    return %c0_i32, %c0_i32_0 : i32, i32
  }
  func.func @transform_9(%arg0: i32) -> (i32, i32) {
    %c0_i32 = arith.constant 0 : i32
    %c0_i32_0 = arith.constant 0 : i32
    return %arg0, %c0_i32 : i32, i32
  }
}

</mosaic_0001>

<llo_original>
// kernel: tpu_custom_call.1
$region0: #{tpu_custom_call.1}
  #allocation0 [shape = 'u32[]', space=smem, size = 0x4, offset = 0x4, fixed_abs, tag = 'smem constant byte address 0x4 - core index']
  #allocation1 [shape = 'u32[72,128]{1,0:T(1,128)}', space=vmem, size = 0x9000, scoped, tag = 'internal scratch']
  %s0 = inlined_call_operand.hbm [shape: f32[16,32], index: 0, kind: input, shape index: {}]
  %s1 = inlined_call_operand.hbm [shape: bf16[32,32], index: 1, kind: input, shape index: {}]
  %s2 = inlined_call_operand.vmem [shape: f32[1,32], index: 2, kind: input, shape index: {}]
  %s3 = inlined_call_operand.hbm [shape: bf16[32,32], index: 3, kind: input, shape index: {}]
  %s4 = inlined_call_operand.vmem [shape: f32[1,32], index: 4, kind: input, shape index: {}]
  %s5 = inlined_call_operand.hbm [shape: bf16[32,32], index: 5, kind: input, shape index: {}]
  %s6 = inlined_call_operand.vmem [shape: f32[1,32], index: 6, kind: input, shape index: {}]
  %s7 = inlined_call_operand.hbm [shape: bf16[32,128], index: 7, kind: input, shape index: {}]
  %s8 = inlined_call_operand.vmem [shape: f32[1,128], index: 8, kind: input, shape index: {}]
  %s9 = inlined_call_operand.hbm [shape: f32[16,128], index: 9, kind: output, shape index: {}]
  %s10 = sld [smem:[#allocation0]]
  $region89: #{tpu_custom_call.1} parent=0
    _
  %s12 = ssub.s32 1, %s10
  %s13 = scalar_select 0, %s12, %s10
  $region1: #{tpu_custom_call.1} parent=0
    #allocation2 [shape = 'u8[8192]{0}', space=vmem, size = 0x2000, scoped, tag = 'input window, operand 0']
    #allocation3 [shape = 's32[2]{0}', space=sflag, size = 0x8, scoped, tag = 'scoped memory for tpu_custom_call.1']
    #allocation4 [shape = 's32[2]{0}', space=sflag, size = 0x8, scoped, tag = 'scoped memory for tpu_custom_call.1']
    #allocation5 [shape = 'u8[8192]{0}', space=vmem, size = 0x2000, scoped, tag = 'input window, operand 1, single buffered']
    #allocation6 [shape = 's32[1]{0}', space=sflag, size = 0x4, scoped, tag = 'scoped memory for tpu_custom_call.1']
    #allocation7 [shape = 'u8[8192]{0}', space=vmem, size = 0x2000, scoped, tag = 'input window, operand 3, single buffered']
    #allocation8 [shape = 'u8[8192]{0}', space=vmem, size = 0x2000, scoped, tag = 'input window, operand 5, single buffered']
    #allocation9 [shape = 's32[1]{0}', space=sflag, size = 0x4, scoped, tag = 'scoped memory for tpu_custom_call.1']
    #allocation10 [shape = 'u8[8192]{0}', space=vmem, size = 0x2000, scoped, tag = 'input window, operand 7, single buffered']
    #allocation11 [shape = 'u8[8192]{0}', space=vmem, size = 0x2000, scoped, tag = 'output window, operand 0']
    %14 = vsyncpa [#allocation3], 0
    %s15 = scalar_lea.sflag [#allocation3], 1
    %16 = vsyncpa %s15, 0
    %17 = vsyncpa [#allocation6], 0
    %18 = vsyncpa [#allocation9], 0
    %19 = vsyncpa [#allocation4], 0
    %s20 = scalar_lea.sflag [#allocation4], 1
    %21 = vsyncpa %s20, 0
    loop: start=0, step=1, limit=4
    $region2: #{tpu_custom_call.1} parent=1 // loop_pre_header
      _
    $region3: #{tpu_custom_call.1} parent=1 // loop_header
      %s23 = sphi 0, %s27
      %p24 = scmp.ge.s32.totalorder %s23, 4
      %s33 = sphi 0, %s35
      %s36 = sphi 0, %s33
      %s37 = sphi 0, %s36
      %s53 = sphi 0, %s37
      %s57 = sphi 0, %s57
      %s59 = sphi 0, %s57
      %s60 = sphi 0, %s59
      %s74 = sphi 0, %s60
      %s78 = sphi 0, %s78
      %s80 = sphi 0, %s78
      %s81 = sphi 0, %s80
      %s95 = sphi 0, %s81
      %s99 = sphi 0, %s99
      %s101 = sphi 0, %s99
      %s102 = sphi 0, %s101
      %s116 = sphi 0, %s102
      %s120 = sphi 0, %s120
      %s122 = sphi 0, %s120
      %s123 = sphi 0, %s122
      %s137 = sphi 0, %s123
      %s141 = sphi 0, %s141
      %s143 = sphi 0, %s141
      %s144 = sphi 0, %s143
      %s158 = sphi 0, %s144
      %s162 = sphi 0, %s162
      %s164 = sphi 0, %s162
      %s165 = sphi 0, %s164
      %s179 = sphi 0, %s165
      %s183 = sphi 0, %s183
      %s185 = sphi 0, %s183
      %s186 = sphi 0, %s185
      %s200 = sphi 0, %s186
      %s204 = sphi 0, %s204
      %s206 = sphi 0, %s204
      %s207 = sphi 0, %s206
      %s221 = sphi 0, %s207
      %s227 = sphi 0, %s229
      %s230 = sphi 0, %s227
      %s231 = sphi 0, %s230
      %s247 = sphi 0, %s231
    $region4: #{tpu_custom_call.1} parent=1 // loop_header_branch
      %26 = sbr.rel (%p24) target = $region8
    $region5: #{tpu_custom_call.1} parent=1 // loop_body
      %s28 = ssub.s32 %s23, 1
      %s29 = ssub.s32 %s23, 2
      %s30 = sadd.s32 %s23, 1
      %s31 = ssub.s32 %s23, %s30
      %p32 = scmp.eq.s32.totalorder %s31, 0
      %s34 = sadd.s32 %s33, 1
      %s35 = scalar_select %p32, %s33, %s34
      %p38 = pneg %p32
      %p39 = scmp.eq.s32.totalorder %s23, 1
      %p40 = por %p38, %p39
      %p41 = scmp.ne.s32.totalorder %s33, %s36
      %p42 = scmp.eq.s32.totalorder %s23, 0
      %p43 = por %p41, %p42
      %p44 = scmp.ne.s32.totalorder %s33, %s36
      %p45 = scmp.eq.s32.totalorder %s28, 1
      %p46 = por %p44, %p45
      %p47 = scmp.ne.s32.totalorder %s36, %s37
      %p48 = scmp.eq.s32.totalorder %s28, 0
      %p49 = por %p47, %p48
      %p50 = scmp.ne.s32.totalorder %s36, %s37
      %p51 = scmp.eq.s32.totalorder %s29, 1
      %p52 = por %p50, %p51
      %p54 = scmp.ne.s32.totalorder %s37, %s53
      %p55 = scmp.eq.s32.totalorder %s29, 0
      %p56 = por %p54, %p55
      %s58 = sadd.s32 %s57, 1
      %p61 = scmp.eq.s32.totalorder %s23, 1
      %p62 = scmp.ne.s32.totalorder %s57, %s59
      %p63 = scmp.eq.s32.totalorder %s23, 0
      %p64 = por %p62, %p63
      %p65 = scmp.ne.s32.totalorder %s57, %s59
      %p66 = scmp.eq.s32.totalorder %s28, 1
      %p67 = por %p65, %p66
      %p68 = scmp.ne.s32.totalorder %s59, %s60
      %p69 = scmp.eq.s32.totalorder %s28, 0
      %p70 = por %p68, %p69
      %p71 = scmp.ne.s32.totalorder %s59, %s60
      %p72 = scmp.eq.s32.totalorder %s29, 1
      %p73 = por %p71, %p72
      %p75 = scmp.ne.s32.totalorder %s60, %s74
      %p76 = scmp.eq.s32.totalorder %s29, 0
      %p77 = por %p75, %p76
      %s79 = sadd.s32 %s78, 1
      %p82 = scmp.eq.s32.totalorder %s23, 1
      %p83 = scmp.ne.s32.totalorder %s78, %s80
      %p84 = scmp.eq.s32.totalorder %s23, 0
      %p85 = por %p83, %p84
      %p86 = scmp.ne.s32.totalorder %s78, %s80
      %p87 = scmp.eq.s32.totalorder %s28, 1
      %p88 = por %p86, %p87
      %p89 = scmp.ne.s32.totalorder %s80, %s81
      %p90 = scmp.eq.s32.totalorder %s28, 0
      %p91 = por %p89, %p90
      %p92 = scmp.ne.s32.totalorder %s80, %s81
      %p93 = scmp.eq.s32.totalorder %s29, 1
      %p94 = por %p92, %p93
      %p96 = scmp.ne.s32.totalorder %s81, %s95
      %p97 = scmp.eq.s32.totalorder %s29, 0
      %p98 = por %p96, %p97
      %s100 = sadd.s32 %s99, 1
      %p103 = scmp.eq.s32.totalorder %s23, 1
      %p104 = scmp.ne.s32.totalorder %s99, %s101
      %p105 = scmp.eq.s32.totalorder %s23, 0
      %p106 = por %p104, %p105
      %p107 = scmp.ne.s32.totalorder %s99, %s101
      %p108 = scmp.eq.s32.totalorder %s28, 1
      %p109 = por %p107, %p108
      %p110 = scmp.ne.s32.totalorder %s101, %s102
      %p111 = scmp.eq.s32.totalorder %s28, 0
      %p112 = por %p110, %p111
      %p113 = scmp.ne.s32.totalorder %s101, %s102
      %p114 = scmp.eq.s32.totalorder %s29, 1
      %p115 = por %p113, %p114
      %p117 = scmp.ne.s32.totalorder %s102, %s116
      %p118 = scmp.eq.s32.totalorder %s29, 0
      %p119 = por %p117, %p118
      %s121 = sadd.s32 %s120, 1
      %p124 = scmp.eq.s32.totalorder %s23, 1
      %p125 = scmp.ne.s32.totalorder %s120, %s122
      %p126 = scmp.eq.s32.totalorder %s23, 0
      %p127 = por %p125, %p126
      %p128 = scmp.ne.s32.totalorder %s120, %s122
      %p129 = scmp.eq.s32.totalorder %s28, 1
      %p130 = por %p128, %p129
      %p131 = scmp.ne.s32.totalorder %s122, %s123
      %p132 = scmp.eq.s32.totalorder %s28, 0
      %p133 = por %p131, %p132
      %p134 = scmp.ne.s32.totalorder %s122, %s123
      %p135 = scmp.eq.s32.totalorder %s29, 1
      %p136 = por %p134, %p135
      %p138 = scmp.ne.s32.totalorder %s123, %s137
      %p139 = scmp.eq.s32.totalorder %s29, 0
      %p140 = por %p138, %p139
      %s142 = sadd.s32 %s141, 1
      %p145 = scmp.eq.s32.totalorder %s23, 1
      %p146 = scmp.ne.s32.totalorder %s141, %s143
      %p147 = scmp.eq.s32.totalorder %s23, 0
      %p148 = por %p146, %p147
      %p149 = scmp.ne.s32.totalorder %s141, %s143
      %p150 = scmp.eq.s32.totalorder %s28, 1
      %p151 = por %p149, %p150
      %p152 = scmp.ne.s32.totalorder %s143, %s144
      %p153 = scmp.eq.s32.totalorder %s28, 0
      %p154 = por %p152, %p153
      %p155 = scmp.ne.s32.totalorder %s143, %s144
      %p156 = scmp.eq.s32.totalorder %s29, 1
      %p157 = por %p155, %p156
      %p159 = scmp.ne.s32.totalorder %s144, %s158
      %p160 = scmp.eq.s32.totalorder %s29, 0
      %p161 = por %p159, %p160
      %s163 = sadd.s32 %s162, 1
      %p166 = scmp.eq.s32.totalorder %s23, 1
      %p167 = scmp.ne.s32.totalorder %s162, %s164
      %p168 = scmp.eq.s32.totalorder %s23, 0
      %p169 = por %p167, %p168
      %p170 = scmp.ne.s32.totalorder %s162, %s164
      %p171 = scmp.eq.s32.totalorder %s28, 1
      %p172 = por %p170, %p171
      %p173 = scmp.ne.s32.totalorder %s164, %s165
      %p174 = scmp.eq.s32.totalorder %s28, 0
      %p175 = por %p173, %p174
      %p176 = scmp.ne.s32.totalorder %s164, %s165
      %p177 = scmp.eq.s32.totalorder %s29, 1
      %p178 = por %p176, %p177
      %p180 = scmp.ne.s32.totalorder %s165, %s179
      %p181 = scmp.eq.s32.totalorder %s29, 0
      %p182 = por %p180, %p181
      %s184 = sadd.s32 %s183, 1
      %p187 = scmp.eq.s32.totalorder %s23, 1
      %p188 = scmp.ne.s32.totalorder %s183, %s185
      %p189 = scmp.eq.s32.totalorder %s23, 0
      %p190 = por %p188, %p189
      %p191 = scmp.ne.s32.totalorder %s183, %s185
      %p192 = scmp.eq.s32.totalorder %s28, 1
      %p193 = por %p191, %p192
      %p194 = scmp.ne.s32.totalorder %s185, %s186
      %p195 = scmp.eq.s32.totalorder %s28, 0
      %p196 = por %p194, %p195
      %p197 = scmp.ne.s32.totalorder %s185, %s186
      %p198 = scmp.eq.s32.totalorder %s29, 1
      %p199 = por %p197, %p198
      %p201 = scmp.ne.s32.totalorder %s186, %s200
      %p202 = scmp.eq.s32.totalorder %s29, 0
      %p203 = por %p201, %p202
      %s205 = sadd.s32 %s204, 1
      %p208 = scmp.eq.s32.totalorder %s23, 1
      %p209 = scmp.ne.s32.totalorder %s204, %s206
      %p210 = scmp.eq.s32.totalorder %s23, 0
      %p211 = por %p209, %p210
      %p212 = scmp.ne.s32.totalorder %s204, %s206
      %p213 = scmp.eq.s32.totalorder %s28, 1
      %p214 = por %p212, %p213
      %p215 = scmp.ne.s32.totalorder %s206, %s207
      %p216 = scmp.eq.s32.totalorder %s28, 0
      %p217 = por %p215, %p216
      %p218 = scmp.ne.s32.totalorder %s206, %s207
      %p219 = scmp.eq.s32.totalorder %s29, 1
      %p220 = por %p218, %p219
      %p222 = scmp.ne.s32.totalorder %s207, %s221
      %p223 = scmp.eq.s32.totalorder %s29, 0
      %p224 = por %p222, %p223
      %s225 = ssub.s32 %s23, %s30
      %p226 = scmp.eq.s32.totalorder %s225, 0
      %s228 = sadd.s32 %s227, 1
      %s229 = scalar_select %p226, %s227, %s228
      %p232 = pneg %p226
      %p233 = scmp.eq.s32.totalorder %s23, 1
      %p234 = por %p232, %p233
      %p235 = scmp.ne.s32.totalorder %s227, %s230
      %p236 = scmp.eq.s32.totalorder %s23, 0
      %p237 = por %p235, %p236
      %p238 = scmp.ne.s32.totalorder %s227, %s230
      %p239 = scmp.eq.s32.totalorder %s28, 1
      %p240 = por %p238, %p239
      %p241 = scmp.ne.s32.totalorder %s230, %s231
      %p242 = scmp.eq.s32.totalorder %s28, 0
      %p243 = por %p241, %p242
      %p244 = scmp.ne.s32.totalorder %s230, %s231
      %p245 = scmp.eq.s32.totalorder %s29, 1
      %p246 = por %p244, %p245
      %p248 = scmp.ne.s32.totalorder %s231, %s247
      %p249 = scmp.eq.s32.totalorder %s29, 0
      %p250 = por %p248, %p249
      %p251 = scmp.le.s32.totalorder 1, %s23
      %p252 = scmp.lt.s32.totalorder %s23, 3
      %p253 = pnand %p251, %p252
      %p254 = pneg %p253
      // Predicated region
      $region9: #{tpu_custom_call.1} parent=5 // pred_check
        _
      $region10: #{tpu_custom_call.1} parent=5 // pred_check_branch
        %256 = sbr.rel (%p253) target = $region12
      $region11: #{tpu_custom_call.1} parent=5 // pred_region
        %s257 = ssub.s32 %s23, 1
        // Predicated region
        $region13: #{tpu_custom_call.1} parent=11 // pred_check
          %p258 = pneg %p70
        $region14: #{tpu_custom_call.1} parent=11 // pred_check_branch
          %260 = sbr.rel (%p258) target = $region16
        $region15: #{tpu_custom_call.1} parent=11 // pred_region
          %262 = vsyncadd [#allocation6], 0
          %s263 = sshll.u32 %s1, 4
          %s264 = int_to_ptr.hbm [resolvable:$true] %s263
          %s265 = sshll.u32 [#allocation5], 4
          %s266 = int_to_ptr.vmem [resolvable:$true] %s265
          %271 = dma.hbm_to_vmem [thread:$0]  %s264, 256, %s266, [#allocation6], 64, 64, 4
        $region16: #{tpu_custom_call.1} parent=11 // pred_fallthru
          _
        // Predicated region
        $region17: #{tpu_custom_call.1} parent=11 // pred_check
          %p272 = pneg %p91
        $region18: #{tpu_custom_call.1} parent=11 // pred_check_branch
          %274 = sbr.rel (%p272) target = $region20
        $region19: #{tpu_custom_call.1} parent=11 // pred_region
          _
        $region20: #{tpu_custom_call.1} parent=11 // pred_fallthru
          _
        // Predicated region
        $region21: #{tpu_custom_call.1} parent=11 // pred_check
          %p275 = pneg %p112
        $region22: #{tpu_custom_call.1} parent=11 // pred_check_branch
          %277 = sbr.rel (%p275) target = $region24
        $region23: #{tpu_custom_call.1} parent=11 // pred_region
          %279 = vsyncadd [#allocation6], 0
          %s280 = sshll.u32 %s3, 4
          %s281 = int_to_ptr.hbm [resolvable:$true] %s280
          %s282 = sshll.u32 [#allocation7], 4
          %s283 = int_to_ptr.vmem [resolvable:$true] %s282
          %288 = dma.hbm_to_vmem [thread:$0]  %s281, 256, %s283, [#allocation6], 64, 64, 4
        $region24: #{tpu_custom_call.1} parent=11 // pred_fallthru
          _
        // Predicated region
        $region25: #{tpu_custom_call.1} parent=11 // pred_check
          %p289 = pneg %p133
        $region26: #{tpu_custom_call.1} parent=11 // pred_check_branch
          %291 = sbr.rel (%p289) target = $region28
        $region27: #{tpu_custom_call.1} parent=11 // pred_region
          _
        $region28: #{tpu_custom_call.1} parent=11 // pred_fallthru
          _
        // Predicated region
        $region29: #{tpu_custom_call.1} parent=11 // pred_check
          %p292 = pneg %p154
        $region30: #{tpu_custom_call.1} parent=11 // pred_check_branch
          %294 = sbr.rel (%p292) target = $region32
        $region31: #{tpu_custom_call.1} parent=11 // pred_region
          %296 = vsyncadd [#allocation9], 0
          %s297 = sshll.u32 %s5, 4
          %s298 = int_to_ptr.hbm [resolvable:$true] %s297
          %s299 = sshll.u32 [#allocation8], 4
          %s300 = int_to_ptr.vmem [resolvable:$true] %s299
          %305 = dma.hbm_to_vmem [thread:$0]  %s298, 256, %s300, [#allocation9], 64, 64, 4
        $region32: #{tpu_custom_call.1} parent=11 // pred_fallthru
          _
        // Predicated region
        $region33: #{tpu_custom_call.1} parent=11 // pred_check
          %p306 = pneg %p175
        $region34: #{tpu_custom_call.1} parent=11 // pred_check_branch
          %308 = sbr.rel (%p306) target = $region36
        $region35: #{tpu_custom_call.1} parent=11 // pred_region
          _
        $region36: #{tpu_custom_call.1} parent=11 // pred_fallthru
          _
        // Predicated region
        $region37: #{tpu_custom_call.1} parent=11 // pred_check
          %p309 = pneg %p196
        $region38: #{tpu_custom_call.1} parent=11 // pred_check_branch
          %311 = sbr.rel (%p309) target = $region40
        $region39: #{tpu_custom_call.1} parent=11 // pred_region
          %313 = vsyncadd [#allocation9], 0
          %s314 = sshll.u32 %s7, 4
          %s315 = int_to_ptr.hbm [resolvable:$true] %s314
          %s316 = sshll.u32 [#allocation10], 4
          %s317 = int_to_ptr.vmem [resolvable:$true] %s316
          %322 = dma.hbm_to_vmem [thread:$0]  %s315, 256, %s317, [#allocation9], 64, 64, 4
        $region40: #{tpu_custom_call.1} parent=11 // pred_fallthru
          _
        // Predicated region
        $region41: #{tpu_custom_call.1} parent=11 // pred_check
          %p323 = pneg %p217
        $region42: #{tpu_custom_call.1} parent=11 // pred_check_branch
          %325 = sbr.rel (%p323) target = $region44
        $region43: #{tpu_custom_call.1} parent=11 // pred_region
          _
        $region44: #{tpu_custom_call.1} parent=11 // pred_fallthru
          _
      $region12: #{tpu_custom_call.1} parent=5 // pred_fallthru
        _
      %p326 = scmp.lt.s32.totalorder %s23, 2
      // Predicated region
      $region45: #{tpu_custom_call.1} parent=5 // pred_check
        %p327 = pneg %p326
      $region46: #{tpu_custom_call.1} parent=5 // pred_check_branch
        %329 = sbr.rel (%p327) target = $region48
      $region47: #{tpu_custom_call.1} parent=5 // pred_region
        // Predicated region
        $region49: #{tpu_custom_call.1} parent=47 // pred_check
          %p330 = pneg %p43
        $region50: #{tpu_custom_call.1} parent=47 // pred_check_branch
          %332 = sbr.rel (%p330) target = $region52
        $region51: #{tpu_custom_call.1} parent=47 // pred_region
          %s333 = sand.u32 %s33, 1
          %s334 = scalar_lea.sflag [#allocation3], %s333
          %s335 = sand.u32 %s33, 1
          %s336 = smul.addr %s335, 8
          %s337 = scalar_lea.vmem [#allocation2], %s336
          %339 = vsyncadd %s334, 0
          %s340 = smul.addr %s23, 8
          %s341 = scalar_lea.hbm %s0, %s340
          %s343 = sshll.u32 %s341, 4
          %s344 = int_to_ptr.hbm [resolvable:$true] %s343
          %s345 = sshll.u32 %s337, 4
          %s346 = int_to_ptr.vmem [resolvable:$true] %s345
          %348 = dma.hbm_to_vmem [thread:$0]  %s344, 128, %s346, %s334
        $region52: #{tpu_custom_call.1} parent=47 // pred_fallthru
          _
      $region48: #{tpu_custom_call.1} parent=5 // pred_fallthru
        _
      %p349 = scmp.le.s32.totalorder 1, %s23
      %p350 = scmp.lt.s32.totalorder %s23, 3
      %p351 = pnand %p349, %p350
      %p352 = pneg %p351
      // Predicated region
      $region53: #{tpu_custom_call.1} parent=5 // pred_check
        _
      $region54: #{tpu_custom_call.1} parent=5 // pred_check_branch
        %354 = sbr.rel (%p351) target = $region56
      $region55: #{tpu_custom_call.1} parent=5 // pred_region
        %s355 = ssub.s32 %s23, 1
        %s356 = sand.u32 %s36, 1
        %s357 = scalar_lea.sflag [#allocation3], %s356
        %s358 = sand.u32 %s36, 1
        %s359 = smul.addr %s358, 8
        %s360 = scalar_lea.vmem [#allocation2], %s359
        // Predicated region
        $region57: #{tpu_custom_call.1} parent=55 // pred_check
          %p361 = pneg %p49
        $region58: #{tpu_custom_call.1} parent=55 // pred_check_branch
          %363 = sbr.rel (%p361) target = $region60
        $region59: #{tpu_custom_call.1} parent=55 // pred_region
          %365 = dma.done %s357, 128
        $region60: #{tpu_custom_call.1} parent=55 // pred_fallthru
          _
        // Predicated region
        $region61: #{tpu_custom_call.1} parent=55 // pred_check
          %p366 = pneg %p70
        $region62: #{tpu_custom_call.1} parent=55 // pred_check_branch
          %368 = sbr.rel (%p366) target = $region64
        $region63: #{tpu_custom_call.1} parent=55 // pred_region
          %370 = dma.done [#allocation6], 256
        $region64: #{tpu_custom_call.1} parent=55 // pred_fallthru
          _
        // Predicated region
        $region65: #{tpu_custom_call.1} parent=55 // pred_check
          %p371 = pneg %p112
        $region66: #{tpu_custom_call.1} parent=55 // pred_check_branch
          %373 = sbr.rel (%p371) target = $region68
        $region67: #{tpu_custom_call.1} parent=55 // pred_region
          %375 = dma.done [#allocation6], 256
        $region68: #{tpu_custom_call.1} parent=55 // pred_fallthru
          _
        // Predicated region
        $region69: #{tpu_custom_call.1} parent=55 // pred_check
          %p376 = pneg %p154
        $region70: #{tpu_custom_call.1} parent=55 // pred_check_branch
          %378 = sbr.rel (%p376) target = $region72
        $region71: #{tpu_custom_call.1} parent=55 // pred_region
          %380 = dma.done [#allocation9], 256
        $region72: #{tpu_custom_call.1} parent=55 // pred_fallthru
          _
        // Predicated region
        $region73: #{tpu_custom_call.1} parent=55 // pred_check
          %p381 = pneg %p196
        $region74: #{tpu_custom_call.1} parent=55 // pred_check_branch
          %383 = sbr.rel (%p381) target = $region76
        $region75: #{tpu_custom_call.1} parent=55 // pred_region
          %385 = dma.done [#allocation9], 256
        $region76: #{tpu_custom_call.1} parent=55 // pred_fallthru
          _
        %s386 = sand.u32 %s36, 1
        %s387 = scalar_lea.sflag [#allocation3], %s386
        %s388 = sand.u32 %s36, 1
        %s389 = smul.addr %s388, 8
        %s390 = scalar_lea.vmem [#allocation2], %s389
        %p391 = pneg %p49
        %p392 = pneg %p46
        %p393 = pneg %p70
        %p394 = pneg %p67
        %p395 = pneg %p91
        %p396 = pneg %p88
        %p397 = pneg %p112
        %p398 = pneg %p109
        %p399 = pneg %p133
        %p400 = pneg %p130
        %p401 = pneg %p154
        %p402 = pneg %p151
        %p403 = pneg %p175
        %p404 = pneg %p172
        %p405 = pneg %p196
        %p406 = pneg %p193
        %p407 = pneg %p217
        %p408 = pneg %p214
        %p409 = pneg %p243
        %p410 = pneg %p240
        %s411 = sand.u32 %s230, 1
        %s412 = scalar_lea.sflag [#allocation4], %s411
        %s413 = sand.u32 %s230, 1
        %s414 = smul.addr %s413, 8
        %s415 = scalar_lea.vmem [#allocation11], %s414
        %v417 = vld [vmem:[%s360] sm:$0xff]
        %v418 = vpack.c.bf16 %v417, %v417
        %v419 = vld [vmem:[#allocation5] sm:$0xf]
        %v420 = vld [vmem:[#allocation5 + $0x4] sm:$0xf]
        %v421 = vld [vmem:[#allocation5 + $0x8] sm:$0xf]
        %v422 = vld [vmem:[#allocation5 + $0xc] sm:$0xf]
        %v423 = vld [vmem:[%s2] sm:$0x1]
        %v425 = vperm.slane %v423, 0
        %v431 = vunpack.c.l.b16 %v419
        %v432 = vunpack.c.l.b16 %v420
        %v433 = vunpack.c.l.b16 %v421
        %v434 = vunpack.c.l.b16 %v422
        %v435 = vpack.c.b16 %v432, %v431
        %v436 = vpack.c.b16 %v434, %v433
        %vm439 = vcmask 261120
        %v441 = vsel %vm439, %v418, 0
        %443 = vmatpush.bf16.msra.mxu0 0
        %444 = vmatpush.bf16.msra.mxu0 0
        %445 = vmatpush.bf16.msra.mxu0 0
        %446 = vmatpush.bf16.msra.mxu0 0
        %447 = vmatpush.bf16.msra.mxu0 0
        %448 = vmatpush.bf16.msra.mxu0 0
        %449 = vmatpush.bf16.msra.mxu0 %v436
        %450 = vmatpush.bf16.msra.mxu0 %v435
        %451 = vmatmul.bf16.gmra.mxu0 %v441
        %v452 = vpop.f32.mrf.mxu0
        %v453 = vadd.f32 %v425, %v452
        %v454 = vpop.f32.mrf.mxu0
        %455 = vdwg.mxu0
        %v456 = vmax.f32 %v453, 0.0
        %v457 = vpack.c.bf16 %v456, %v456
        %v458 = vld [vmem:[#allocation7] sm:$0xf]
        %v459 = vld [vmem:[#allocation7 + $0x4] sm:$0xf]
        %v460 = vld [vmem:[#allocation7 + $0x8] sm:$0xf]
        %v461 = vld [vmem:[#allocation7 + $0xc] sm:$0xf]
        %v462 = vld [vmem:[%s4] sm:$0x1]
        %v464 = vperm.slane %v462, 0
        %v470 = vunpack.c.l.b16 %v458
        %v471 = vunpack.c.l.b16 %v459
        %v472 = vunpack.c.l.b16 %v460
        %v473 = vunpack.c.l.b16 %v461
        %v474 = vpack.c.b16 %v471, %v470
        %v475 = vpack.c.b16 %v473, %v472
        %v479 = vsel %vm439, %v457, 0
        %481 = vmatpush.bf16.msra.mxu0 0
        %482 = vmatpush.bf16.msra.mxu0 0
        %483 = vmatpush.bf16.msra.mxu0 0
        %484 = vmatpush.bf16.msra.mxu0 0
        %485 = vmatpush.bf16.msra.mxu0 0
        %486 = vmatpush.bf16.msra.mxu0 0
        %487 = vmatpush.bf16.msra.mxu0 %v475
        %488 = vmatpush.bf16.msra.mxu0 %v474
        %489 = vmatmul.bf16.gmra.mxu0 %v479
        %v490 = vpop.f32.mrf.mxu0
        %v491 = vadd.f32 %v464, %v490
        %v492 = vpop.f32.mrf.mxu0
        %493 = vdwg.mxu0
        %v494 = vmax.f32 %v491, 0.0
        %v495 = vpack.c.bf16 %v494, %v494
        %v496 = vld [vmem:[#allocation8] sm:$0xf]
        %v497 = vld [vmem:[#allocation8 + $0x4] sm:$0xf]
        %v498 = vld [vmem:[#allocation8 + $0x8] sm:$0xf]
        %v499 = vld [vmem:[#allocation8 + $0xc] sm:$0xf]
        %v500 = vld [vmem:[%s6] sm:$0x1]
        %v502 = vperm.slane %v500, 0
        %v508 = vunpack.c.l.b16 %v496
        %v509 = vunpack.c.l.b16 %v497
        %v510 = vunpack.c.l.b16 %v498
        %v511 = vunpack.c.l.b16 %v499
        %v512 = vpack.c.b16 %v509, %v508
        %v513 = vpack.c.b16 %v511, %v510
        %v517 = vsel %vm439, %v495, 0
        %519 = vmatpush.bf16.msra.mxu0 0
        %520 = vmatpush.bf16.msra.mxu0 0
        %521 = vmatpush.bf16.msra.mxu0 0
        %522 = vmatpush.bf16.msra.mxu0 0
        %523 = vmatpush.bf16.msra.mxu0 0
        %524 = vmatpush.bf16.msra.mxu0 0
        %525 = vmatpush.bf16.msra.mxu0 %v513
        %526 = vmatpush.bf16.msra.mxu0 %v512
        %527 = vmatmul.bf16.gmra.mxu0 %v517
        %v528 = vpop.f32.mrf.mxu0
        %v529 = vadd.f32 %v502, %v528
        %v530 = vpop.f32.mrf.mxu0
        %531 = vdwg.mxu0
        %v532 = vadd.f32 %v529, %v417
        %v533 = vpack.c.bf16 %v532, %v532
        %v534 = vld [vmem:[#allocation10] sm:$0xf]
        %v535 = vld [vmem:[#allocation10 + $0x4] sm:$0xf]
        %v536 = vld [vmem:[#allocation10 + $0x8] sm:$0xf]
        %v537 = vld [vmem:[#allocation10 + $0xc] sm:$0xf]
        %v538 = vld [vmem:[%s8] sm:$0x1]
        %v540 = vperm.slane %v538, 0
        %v546 = vunpack.c.l.b16 %v534
        %v547 = vunpack.c.l.b16 %v535
        %v548 = vunpack.c.l.b16 %v536
        %v549 = vunpack.c.l.b16 %v537
        %v550 = vpack.c.b16 %v547, %v546
        %v551 = vpack.c.b16 %v549, %v548
        %v555 = vsel %vm439, %v533, 0
        %557 = vmatpush.bf16.msra.mxu0 0
        %558 = vmatpush.bf16.msra.mxu0 0
        %559 = vmatpush.bf16.msra.mxu0 0
        %560 = vmatpush.bf16.msra.mxu0 0
        %561 = vmatpush.bf16.msra.mxu0 0
        %562 = vmatpush.bf16.msra.mxu0 0
        %563 = vmatpush.bf16.msra.mxu0 %v551
        %564 = vmatpush.bf16.msra.mxu0 %v550
        %565 = vmatmul.bf16.gmra.mxu0 %v555
        %v566 = vpop.f32.mrf.mxu0
        %v567 = vadd.f32 %v540, %v566
        %v568 = vpop.f32.mrf.mxu0
        %569 = vdwg.mxu0
        %570 = vst [vmem:[%s415] sm:$0xff] %v567
        %s571 = sand.u32 %s230, 1
        %s572 = scalar_lea.sflag [#allocation4], %s571
        %s573 = sand.u32 %s230, 1
        %s574 = smul.addr %s573, 8
        %s575 = scalar_lea.vmem [#allocation11], %s574
        // Predicated region
        $region77: #{tpu_custom_call.1} parent=55 // pred_check
          %p576 = pneg %p240
        $region78: #{tpu_custom_call.1} parent=55 // pred_check_branch
          %578 = sbr.rel (%p576) target = $region80
        $region79: #{tpu_custom_call.1} parent=55 // pred_region
          %580 = vsyncadd %s572, 0
          %s581 = smul.addr %s28, 8
          %s582 = scalar_lea.hbm %s9, %s581
          %s584 = sshll.u32 %s575, 4
          %s585 = int_to_ptr.vmem [resolvable:$true] %s584
          %s586 = sshll.u32 %s582, 4
          %s587 = int_to_ptr.hbm [resolvable:$true] %s586
          %589 = dma.vmem_to_hbm [thread:$0]  %s585, 128, %s587, %s572
        $region80: #{tpu_custom_call.1} parent=55 // pred_fallthru
          _
      $region56: #{tpu_custom_call.1} parent=5 // pred_fallthru
        _
      %p590 = scmp.le.s32.totalorder 2, %s23
      // Predicated region
      $region81: #{tpu_custom_call.1} parent=5 // pred_check
        %p591 = pneg %p590
      $region82: #{tpu_custom_call.1} parent=5 // pred_check_branch
        %593 = sbr.rel (%p591) target = $region84
      $region83: #{tpu_custom_call.1} parent=5 // pred_region
        %s594 = ssub.s32 %s23, 2
        // Predicated region
        $region85: #{tpu_custom_call.1} parent=83 // pred_check
          %p595 = pneg %p246
        $region86: #{tpu_custom_call.1} parent=83 // pred_check_branch
          %597 = sbr.rel (%p595) target = $region88
        $region87: #{tpu_custom_call.1} parent=83 // pred_region
          %s598 = sand.u32 %s231, 1
          %s599 = scalar_lea.sflag [#allocation4], %s598
          %s600 = sand.u32 %s231, 1
          %s601 = smul.addr %s600, 8
          %s602 = scalar_lea.vmem [#allocation11], %s601
          %604 = dma.done %s599, 128
        $region88: #{tpu_custom_call.1} parent=83 // pred_fallthru
          _
      $region84: #{tpu_custom_call.1} parent=5 // pred_fallthru
        _
    $region6: #{tpu_custom_call.1} parent=1 // loop_footer
      %s27 = sadd.s32 1, %s23
    $region7: #{tpu_custom_call.1} parent=1 // loop_footer_branch
      %22 = sbr.rel target = $region3
    $region8: #{tpu_custom_call.1} parent=1 // loop_exit
      _
    %605 = vsyncpa [#allocation3], 1
    %s606 = scalar_lea.sflag [#allocation3], 1
    %607 = vsyncpa %s606, 1
    %608 = vsyncpa [#allocation6], 1
    %609 = vsyncpa [#allocation9], 1
    %610 = vsyncpa [#allocation4], 1
    %s611 = scalar_lea.sflag [#allocation4], 1
    %612 = vsyncpa %s611, 1

// kernel: tpu_custom_call.1
$region0: #{tpu_custom_call.1}
  #allocation0 [shape = 'u32[]', space=smem, size = 0x4, offset = 0x4, fixed_abs, tag = 'smem constant byte address 0x4 - core index']
  #allocation1 [shape = 'u32[72,128]{1,0:T(1,128)}', space=vmem, size = 0x9000, scoped, tag = 'internal scratch']
  %s0 = inlined_call_operand.hbm [shape: f32[16,32], index: 0, kind: input, shape index: {}]
  %s1 = inlined_call_operand.hbm [shape: bf16[32,32], index: 1, kind: input, shape index: {}]
  %s2 = inlined_call_operand.vmem [shape: f32[1,32], index: 2, kind: input, shape index: {}]
  %s3 = inlined_call_operand.hbm [shape: bf16[32,32], index: 3, kind: input, shape index: {}]
  %s4 = inlined_call_operand.vmem [shape: f32[1,32], index: 4, kind: input, shape index: {}]
  %s5 = inlined_call_operand.hbm [shape: bf16[32,32], index: 5, kind: input, shape index: {}]
  %s6 = inlined_call_operand.vmem [shape: f32[1,32], index: 6, kind: input, shape index: {}]
  %s7 = inlined_call_operand.hbm [shape: bf16[32,128], index: 7, kind: input, shape index: {}]
  %s8 = inlined_call_operand.vmem [shape: f32[1,128], index: 8, kind: input, shape index: {}]
  %s9 = inlined_call_operand.hbm [shape: f32[16,128], index: 9, kind: output, shape index: {}]
  %s10 = sld [smem:[#allocation0]]
  $region89: #{tpu_custom_call.1} parent=0
    _
  %s12 = ssub.s32 1, %s10
  %s13 = scalar_select 0, %s12, %s10
  $region1: #{tpu_custom_call.1} parent=0
    #allocation2 [shape = 'u8[8192]{0}', space=vmem, size = 0x2000, scoped, tag = 'input window, operand 0']
    #allocation3 [shape = 's32[2]{0}', space=sflag, size = 0x8, scoped, tag = 'scoped memory for tpu_custom_call.1']
    #allocation4 [shape = 's32[2]{0}', space=sflag, size = 0x8, scoped, tag = 'scoped memory for tpu_custom_call.1']
    #allocation5 [shape = 'u8[8192]{0}', space=vmem, size = 0x2000, scoped, tag = 'input window, operand 1, single buffered']
    #allocation6 [shape = 's32[1]{0}', space=sflag, size = 0x4, scoped, tag = 'scoped memory for tpu_custom_call.1']
    #allocation7 [shape = 'u8[8192]{0}', space=vmem, size = 0x2000, scoped, tag = 'input window, operand 3, single buffered']
    #allocation8 [shape = 'u8[8192]{0}', space=vmem, size = 0x2000, scoped, tag = 'input window, operand 5, single buffered']
    #allocation9 [shape = 's32[1]{0}', space=sflag, size = 0x4, scoped, tag = 'scoped memory for tpu_custom_call.1']
    #allocation10 [shape = 'u8[8192]{0}', space=vmem, size = 0x2000, scoped, tag = 'input window, operand 7, single buffered']
    #allocation11 [shape = 'u8[8192]{0}', space=vmem, size = 0x2000, scoped, tag = 'output window, operand 0']
    %14 = vsyncpa [#allocation3], 0
    %s15 = scalar_lea.sflag [#allocation3], 1
    %16 = vsyncpa %s15, 0
    %17 = vsyncpa [#allocation6], 0
    %18 = vsyncpa [#allocation9], 0
    %19 = vsyncpa [#allocation4], 0
    %s20 = scalar_lea.sflag [#allocation4], 1
    %21 = vsyncpa %s20, 0
    loop: start=0, step=1, limit=4
    $region2: #{tpu_custom_call.1} parent=1 // loop_pre_header
      _
    $region3: #{tpu_custom_call.1} parent=1 // loop_header
      %s23 = sphi 0, %s27
      %p24 = scmp.ge.s32.totalorder %s23, 4
      %s33 = sphi 0, %s35
      %s36 = sphi 0, %s33
      %s37 = sphi 0, %s36
      %s53 = sphi 0, %s37
      %s57 = sphi 0, %s57
      %s59 = sphi 0, %s57
      %s60 = sphi 0, %s59
      %s74 = sphi 0, %s60
      %s78 = sphi 0, %s78
      %s80 = sphi 0, %s78
      %s81 = sphi 0, %s80
      %s95 = sphi 0, %s81
      %s99 = sphi 0, %s99
      %s101 = sphi 0, %s99
      %s102 = sphi 0, %s101
      %s116 = sphi 0, %s102
      %s120 = sphi 0, %s120
      %s122 = sphi 0, %s120
      %s123 = sphi 0, %s122
      %s137 = sphi 0, %s123
      %s141 = sphi 0, %s141
      %s143 = sphi 0, %s141
      %s144 = sphi 0, %s143
      %s158 = sphi 0, %s144
      %s162 = sphi 0, %s162
      %s164 = sphi 0, %s162
      %s165 = sphi 0, %s164
      %s179 = sphi 0, %s165
      %s183 = sphi 0, %s183
      %s185 = sphi 0, %s183
      %s186 = sphi 0, %s185
      %s200 = sphi 0, %s186
      %s204 = sphi 0, %s204
      %s206 = sphi 0, %s204
      %s207 = sphi 0, %s206
      %s221 = sphi 0, %s207
      %s227 = sphi 0, %s229
      %s230 = sphi 0, %s227
      %s231 = sphi 0, %s230
      %s247 = sphi 0, %s231
    $region4: #{tpu_custom_call.1} parent=1 // loop_header_branch
      %26 = sbr.rel (%p24) target = $region8
    $region5: #{tpu_custom_call.1} parent=1 // loop_body
      %s28 = ssub.s32 %s23, 1
      %s29 = ssub.s32 %s23, 2
      %s30 = sadd.s32 %s23, 1
      %s31 = ssub.s32 %s23, %s30
      %p32 = scmp.eq.s32.totalorder %s31, 0
      %s34 = sadd.s32 %s33, 1
      %s35 = scalar_select %p32, %s33, %s34
      %p38 = pneg %p32
      %p39 = scmp.eq.s32.totalorder %s23, 1
      %p40 = por %p38, %p39
      %p41 = scmp.ne.s32.totalorder %s33, %s36
      %p42 = scmp.eq.s32.totalorder %s23, 0
      %p43 = por %p41, %p42
      %p44 = scmp.ne.s32.totalorder %s33, %s36
      %p45 = scmp.eq.s32.totalorder %s28, 1
      %p46 = por %p44, %p45
      %p47 = scmp.ne.s32.totalorder %s36, %s37
      %p48 = scmp.eq.s32.totalorder %s28, 0
      %p49 = por %p47, %p48
      %p50 = scmp.ne.s32.totalorder %s36, %s37
      %p51 = scmp.eq.s32.totalorder %s29, 1
      %p52 = por %p50, %p51
      %p54 = scmp.ne.s32.totalorder %s37, %s53
      %p55 = scmp.eq.s32.totalorder %s29, 0
      %p56 = por %p54, %p55
      %s58 = sadd.s32 %s57, 1
      %p61 = scmp.eq.s32.totalorder %s23, 1
      %p62 = scmp.ne.s32.totalorder %s57, %s59
      %p63 = scmp.eq.s32.totalorder %s23, 0
      %p64 = por %p62, %p63
      %p65 = scmp.ne.s32.totalorder %s57, %s59
      %p66 = scmp.eq.s32.totalorder %s28, 1
      %p67 = por %p65, %p66
      %p68 = scmp.ne.s32.totalorder %s59, %s60
      %p69 = scmp.eq.s32.totalorder %s28, 0
      %p70 = por %p68, %p69
      %p71 = scmp.ne.s32.totalorder %s59, %s60
      %p72 = scmp.eq.s32.totalorder %s29, 1
      %p73 = por %p71, %p72
      %p75 = scmp.ne.s32.totalorder %s60, %s74
      %p76 = scmp.eq.s32.totalorder %s29, 0
      %p77 = por %p75, %p76
      %s79 = sadd.s32 %s78, 1
      %p82 = scmp.eq.s32.totalorder %s23, 1
      %p83 = scmp.ne.s32.totalorder %s78, %s80
      %p84 = scmp.eq.s32.totalorder %s23, 0
      %p85 = por %p83, %p84
      %p86 = scmp.ne.s32.totalorder %s78, %s80
      %p87 = scmp.eq.s32.totalorder %s28, 1
      %p88 = por %p86, %p87
      %p89 = scmp.ne.s32.totalorder %s80, %s81
      %p90 = scmp.eq.s32.totalorder %s28, 0
      %p91 = por %p89, %p90
      %p92 = scmp.ne.s32.totalorder %s80, %s81
      %p93 = scmp.eq.s32.totalorder %s29, 1
      %p94 = por %p92, %p93
      %p96 = scmp.ne.s32.totalorder %s81, %s95
      %p97 = scmp.eq.s32.totalorder %s29, 0
      %p98 = por %p96, %p97
      %s100 = sadd.s32 %s99, 1
      %p103 = scmp.eq.s32.totalorder %s23, 1
      %p104 = scmp.ne.s32.totalorder %s99, %s101
      %p105 = scmp.eq.s32.totalorder %s23, 0
      %p106 = por %p104, %p105
      %p107 = scmp.ne.s32.totalorder %s99, %s101
      %p108 = scmp.eq.s32.totalorder %s28, 1
      %p109 = por %p107, %p108
      %p110 = scmp.ne.s32.totalorder %s101, %s102
      %p111 = scmp.eq.s32.totalorder %s28, 0
      %p112 = por %p110, %p111
      %p113 = scmp.ne.s32.totalorder %s101, %s102
      %p114 = scmp.eq.s32.totalorder %s29, 1
      %p115 = por %p113, %p114
      %p117 = scmp.ne.s32.totalorder %s102, %s116
      %p118 = scmp.eq.s32.totalorder %s29, 0
      %p119 = por %p117, %p118
      %s121 = sadd.s32 %s120, 1
      %p124 = scmp.eq.s32.totalorder %s23, 1
      %p125 = scmp.ne.s32.totalorder %s120, %s122
      %p126 = scmp.eq.s32.totalorder %s23, 0
      %p127 = por %p125, %p126
      %p128 = scmp.ne.s32.totalorder %s120, %s122
      %p129 = scmp.eq.s32.totalorder %s28, 1
      %p130 = por %p128, %p129
      %p131 = scmp.ne.s32.totalorder %s122, %s123
      %p132 = scmp.eq.s32.totalorder %s28, 0
      %p133 = por %p131, %p132
      %p134 = scmp.ne.s32.totalorder %s122, %s123
      %p135 = scmp.eq.s32.totalorder %s29, 1
      %p136 = por %p134, %p135
      %p138 = scmp.ne.s32.totalorder %s123, %s137
      %p139 = scmp.eq.s32.totalorder %s29, 0
      %p140 = por %p138, %p139
      %s142 = sadd.s32 %s141, 1
      %p145 = scmp.eq.s32.totalorder %s23, 1
      %p146 = scmp.ne.s32.totalorder %s141, %s143
      %p147 = scmp.eq.s32.totalorder %s23, 0
      %p148 = por %p146, %p147
      %p149 = scmp.ne.s32.totalorder %s141, %s143
      %p150 = scmp.eq.s32.totalorder %s28, 1
      %p151 = por %p149, %p150
      %p152 = scmp.ne.s32.totalorder %s143, %s144
      %p153 = scmp.eq.s32.totalorder %s28, 0
      %p154 = por %p152, %p153
      %p155 = scmp.ne.s32.totalorder %s143, %s144
      %p156 = scmp.eq.s32.totalorder %s29, 1
      %p157 = por %p155, %p156
      %p159 = scmp.ne.s32.totalorder %s144, %s158
      %p160 = scmp.eq.s32.totalorder %s29, 0
      %p161 = por %p159, %p160
      %s163 = sadd.s32 %s162, 1
      %p166 = scmp.eq.s32.totalorder %s23, 1
      %p167 = scmp.ne.s32.totalorder %s162, %s164
      %p168 = scmp.eq.s32.totalorder %s23, 0
      %p169 = por %p167, %p168
      %p170 = scmp.ne.s32.totalorder %s162, %s164
      %p171 = scmp.eq.s32.totalorder %s28, 1
      %p172 = por %p170, %p171
      %p173 = scmp.ne.s32.totalorder %s164, %s165
      %p174 = scmp.eq.s32.totalorder %s28, 0
      %p175 = por %p173, %p174
      %p176 = scmp.ne.s32.totalorder %s164, %s165
      %p177 = scmp.eq.s32.totalorder %s29, 1
      %p178 = por %p176, %p177
      %p180 = scmp.ne.s32.totalorder %s165, %s179
      %p181 = scmp.eq.s32.totalorder %s29, 0
      %p182 = por %p180, %p181
      %s184 = sadd.s32 %s183, 1
      %p187 = scmp.eq.s32.totalorder %s23, 1
      %p188 = scmp.ne.s32.totalorder %s183, %s185
      %p189 = scmp.eq.s32.totalorder %s23, 0
      %p190 = por %p188, %p189
      %p191 = scmp.ne.s32.totalorder %s183, %s185
      %p192 = scmp.eq.s32.totalorder %s28, 1
      %p193 = por %p191, %p192
      %p194 = scmp.ne.s32.totalorder %s185, %s186
      %p195 = scmp.eq.s32.totalorder %s28, 0
      %p196 = por %p194, %p195
      %p197 = scmp.ne.s32.totalorder %s185, %s186
      %p198 = scmp.eq.s32.totalorder %s29, 1
      %p199 = por %p197, %p198
      %p201 = scmp.ne.s32.totalorder %s186, %s200
      %p202 = scmp.eq.s32.totalorder %s29, 0
      %p203 = por %p201, %p202
      %s205 = sadd.s32 %s204, 1
      %p208 = scmp.eq.s32.totalorder %s23, 1
      %p209 = scmp.ne.s32.totalorder %s204, %s206
      %p210 = scmp.eq.s32.totalorder %s23, 0
      %p211 = por %p209, %p210
      %p212 = scmp.ne.s32.totalorder %s204, %s206
      %p213 = scmp.eq.s32.totalorder %s28, 1
      %p214 = por %p212, %p213
      %p215 = scmp.ne.s32.totalorder %s206, %s207
      %p216 = scmp.eq.s32.totalorder %s28, 0
      %p217 = por %p215, %p216
      %p218 = scmp.ne.s32.totalorder %s206, %s207
      %p219 = scmp.eq.s32.totalorder %s29, 1
      %p220 = por %p218, %p219
      %p222 = scmp.ne.s32.totalorder %s207, %s221
      %p223 = scmp.eq.s32.totalorder %s29, 0
      %p224 = por %p222, %p223
      %s225 = ssub.s32 %s23, %s30
      %p226 = scmp.eq.s32.totalorder %s225, 0
      %s228 = sadd.s32 %s227, 1
      %s229 = scalar_select %p226, %s227, %s228
      %p232 = pneg %p226
      %p233 = scmp.eq.s32.totalorder %s23, 1
      %p234 = por %p232, %p233
      %p235 = scmp.ne.s32.totalorder %s227, %s230
      %p236 = scmp.eq.s32.totalorder %s23, 0
      %p237 = por %p235, %p236
      %p238 = scmp.ne.s32.totalorder %s227, %s230
      %p239 = scmp.eq.s32.totalorder %s28, 1
      %p240 = por %p238, %p239
      %p241 = scmp.ne.s32.totalorder %s230, %s231
      %p242 = scmp.eq.s32.totalorder %s28, 0
      %p243 = por %p241, %p242
      %p244 = scmp.ne.s32.totalorder %s230, %s231
      %p245 = scmp.eq.s32.totalorder %s29, 1
      %p246 = por %p244, %p245
      %p248 = scmp.ne.s32.totalorder %s231, %s247
      %p249 = scmp.eq.s32.totalorder %s29, 0
      %p250 = por %p248, %p249
      %p251 = scmp.le.s32.totalorder 1, %s23
      %p252 = scmp.lt.s32.totalorder %s23, 3
      %p253 = pnand %p251, %p252
      %p254 = pneg %p253
      // Predicated region
      $region9: #{tpu_custom_call.1} parent=5 // pred_check
        _
      $region10: #{tpu_custom_call.1} parent=5 // pred_check_branch
        %256 = sbr.rel (%p253) target = $region12
      $region11: #{tpu_custom_call.1} parent=5 // pred_region
        %s257 = ssub.s32 %s23, 1
        // Predicated region
        $region13: #{tpu_custom_call.1} parent=11 // pred_check
          %p258 = pneg %p70
        $region14: #{tpu_custom_call.1} parent=11 // pred_check_branch
          %260 = sbr.rel (%p258) target = $region16
        $region15: #{tpu_custom_call.1} parent=11 // pred_region
          %262 = vsyncadd [#allocation6], 0
          %s263 = sshll.u32 %s1, 4
          %s264 = int_to_ptr.hbm [resolvable:$true] %s263
          %s265 = sshll.u32 [#allocation5], 4
          %s266 = int_to_ptr.vmem [resolvable:$true] %s265
          %271 = dma.hbm_to_vmem [thread:$0]  %s264, 256, %s266, [#allocation6], 64, 64, 4
        $region16: #{tpu_custom_call.1} parent=11 // pred_fallthru
          _
        // Predicated region
        $region17: #{tpu_custom_call.1} parent=11 // pred_check
          %p272 = pneg %p91
        $region18: #{tpu_custom_call.1} parent=11 // pred_check_branch
          %274 = sbr.rel (%p272) target = $region20
        $region19: #{tpu_custom_call.1} parent=11 // pred_region
          _
        $region20: #{tpu_custom_call.1} parent=11 // pred_fallthru
          _
        // Predicated region
        $region21: #{tpu_custom_call.1} parent=11 // pred_check
          %p275 = pneg %p112
        $region22: #{tpu_custom_call.1} parent=11 // pred_check_branch
          %277 = sbr.rel (%p275) target = $region24
        $region23: #{tpu_custom_call.1} parent=11 // pred_region
          %279 = vsyncadd [#allocation6], 0
          %s280 = sshll.u32 %s3, 4
          %s281 = int_to_ptr.hbm [resolvable:$true] %s280
          %s282 = sshll.u32 [#allocation7], 4
          %s283 = int_to_ptr.vmem [resolvable:$true] %s282
          %288 = dma.hbm_to_vmem [thread:$0]  %s281, 256, %s283, [#allocation6], 64, 64, 4
        $region24: #{tpu_custom_call.1} parent=11 // pred_fallthru
          _
        // Predicated region
        $region25: #{tpu_custom_call.1} parent=11 // pred_check
          %p289 = pneg %p133
        $region26: #{tpu_custom_call.1} parent=11 // pred_check_branch
          %291 = sbr.rel (%p289) target = $region28
        $region27: #{tpu_custom_call.1} parent=11 // pred_region
          _
        $region28: #{tpu_custom_call.1} parent=11 // pred_fallthru
          _
        // Predicated region
        $region29: #{tpu_custom_call.1} parent=11 // pred_check
          %p292 = pneg %p154
        $region30: #{tpu_custom_call.1} parent=11 // pred_check_branch
          %294 = sbr.rel (%p292) target = $region32
        $region31: #{tpu_custom_call.1} parent=11 // pred_region
          %296 = vsyncadd [#allocation9], 0
          %s297 = sshll.u32 %s5, 4
          %s298 = int_to_ptr.hbm [resolvable:$true] %s297
          %s299 = sshll.u32 [#allocation8], 4
          %s300 = int_to_ptr.vmem [resolvable:$true] %s299
          %305 = dma.hbm_to_vmem [thread:$0]  %s298, 256, %s300, [#allocation9], 64, 64, 4
        $region32: #{tpu_custom_call.1} parent=11 // pred_fallthru
          _
        // Predicated region
        $region33: #{tpu_custom_call.1} parent=11 // pred_check
          %p306 = pneg %p175
        $region34: #{tpu_custom_call.1} parent=11 // pred_check_branch
          %308 = sbr.rel (%p306) target = $region36
        $region35: #{tpu_custom_call.1} parent=11 // pred_region
          _
        $region36: #{tpu_custom_call.1} parent=11 // pred_fallthru
          _
        // Predicated region
        $region37: #{tpu_custom_call.1} parent=11 // pred_check
          %p309 = pneg %p196
        $region38: #{tpu_custom_call.1} parent=11 // pred_check_branch
          %311 = sbr.rel (%p309) target = $region40
        $region39: #{tpu_custom_call.1} parent=11 // pred_region
          %313 = vsyncadd [#allocation9], 0
          %s314 = sshll.u32 %s7, 4
          %s315 = int_to_ptr.hbm [resolvable:$true] %s314
          %s316 = sshll.u32 [#allocation10], 4
          %s317 = int_to_ptr.vmem [resolvable:$true] %s316
          %322 = dma.hbm_to_vmem [thread:$0]  %s315, 256, %s317, [#allocation9], 64, 64, 4
        $region40: #{tpu_custom_call.1} parent=11 // pred_fallthru
          _
        // Predicated region
        $region41: #{tpu_custom_call.1} parent=11 // pred_check
          %p323 = pneg %p217
        $region42: #{tpu_custom_call.1} parent=11 // pred_check_branch
          %325 = sbr.rel (%p323) target = $region44
        $region43: #{tpu_custom_call.1} parent=11 // pred_region
          _
        $region44: #{tpu_custom_call.1} parent=11 // pred_fallthru
          _
      $region12: #{tpu_custom_call.1} parent=5 // pred_fallthru
        _
      %p326 = scmp.lt.s32.totalorder %s23, 2
      // Predicated region
      $region45: #{tpu_custom_call.1} parent=5 // pred_check
        %p327 = pneg %p326
      $region46: #{tpu_custom_call.1} parent=5 // pred_check_branch
        %329 = sbr.rel (%p327) target = $region48
      $region47: #{tpu_custom_call.1} parent=5 // pred_region
        // Predicated region
        $region49: #{tpu_custom_call.1} parent=47 // pred_check
          %p330 = pneg %p43
        $region50: #{tpu_custom_call.1} parent=47 // pred_check_branch
          %332 = sbr.rel (%p330) target = $region52
        $region51: #{tpu_custom_call.1} parent=47 // pred_region
          %s333 = sand.u32 %s33, 1
          %s334 = scalar_lea.sflag [#allocation3], %s333
          %s335 = sand.u32 %s33, 1
          %s336 = smul.addr %s335, 8
          %s337 = scalar_lea.vmem [#allocation2], %s336
          %339 = vsyncadd %s334, 0
          %s340 = smul.addr %s23, 8
          %s341 = scalar_lea.hbm %s0, %s340
          %s343 = sshll.u32 %s341, 4
          %s344 = int_to_ptr.hbm [resolvable:$true] %s343
          %s345 = sshll.u32 %s337, 4
          %s346 = int_to_ptr.vmem [resolvable:$true] %s345
          %348 = dma.hbm_to_vmem [thread:$0]  %s344, 128, %s346, %s334
        $region52: #{tpu_custom_call.1} parent=47 // pred_fallthru
          _
      $region48: #{tpu_custom_call.1} parent=5 // pred_fallthru
        _
      %p349 = scmp.le.s32.totalorder 1, %s23
      %p350 = scmp.lt.s32.totalorder %s23, 3
      %p351 = pnand %p349, %p350
      %p352 = pneg %p351
      // Predicated region
      $region53: #{tpu_custom_call.1} parent=5 // pred_check
        _
      $region54: #{tpu_custom_call.1} parent=5 // pred_check_branch
        %354 = sbr.rel (%p351) target = $region56
      $region55: #{tpu_custom_call.1} parent=5 // pred_region
        %s355 = ssub.s32 %s23, 1
        %s356 = sand.u32 %s36, 1
        %s357 = scalar_lea.sflag [#allocation3], %s356
        %s358 = sand.u32 %s36, 1
        %s359 = smul.addr %s358, 8
        %s360 = scalar_lea.vmem [#allocation2], %s359
        // Predicated region
        $region57: #{tpu_custom_call.1} parent=55 // pred_check
          %p361 = pneg %p49
        $region58: #{tpu_custom_call.1} parent=55 // pred_check_branch
          %363 = sbr.rel (%p361) target = $region60
        $region59: #{tpu_custom_call.1} parent=55 // pred_region
          %365 = dma.done %s357, 128
        $region60: #{tpu_custom_call.1} parent=55 // pred_fallthru
          _
        // Predicated region
        $region61: #{tpu_custom_call.1} parent=55 // pred_check
          %p366 = pneg %p70
        $region62: #{tpu_custom_call.1} parent=55 // pred_check_branch
          %368 = sbr.rel (%p366) target = $region64
        $region63: #{tpu_custom_call.1} parent=55 // pred_region
          %370 = dma.done [#allocation6], 256
        $region64: #{tpu_custom_call.1} parent=55 // pred_fallthru
          _
        // Predicated region
        $region65: #{tpu_custom_call.1} parent=55 // pred_check
          %p371 = pneg %p112
        $region66: #{tpu_custom_call.1} parent=55 // pred_check_branch
          %373 = sbr.rel (%p371) target = $region68
        $region67: #{tpu_custom_call.1} parent=55 // pred_region
          %375 = dma.done [#allocation6], 256
        $region68: #{tpu_custom_call.1} parent=55 // pred_fallthru
          _
        // Predicated region
        $region69: #{tpu_custom_call.1} parent=55 // pred_check
          %p376 = pneg %p154
        $region70: #{tpu_custom_call.1} parent=55 // pred_check_branch
          %378 = sbr.rel (%p376) target = $region72
        $region71: #{tpu_custom_call.1} parent=55 // pred_region
          %380 = dma.done [#allocation9], 256
        $region72: #{tpu_custom_call.1} parent=55 // pred_fallthru
          _
        // Predicated region
        $region73: #{tpu_custom_call.1} parent=55 // pred_check
          %p381 = pneg %p196
        $region74: #{tpu_custom_call.1} parent=55 // pred_check_branch
          %383 = sbr.rel (%p381) target = $region76
        $region75: #{tpu_custom_call.1} parent=55 // pred_region
          %385 = dma.done [#allocation9], 256
        $region76: #{tpu_custom_call.1} parent=55 // pred_fallthru
          _
        %s386 = sand.u32 %s36, 1
        %s387 = scalar_lea.sflag [#allocation3], %s386
        %s388 = sand.u32 %s36, 1
        %s389 = smul.addr %s388, 8
        %s390 = scalar_lea.vmem [#allocation2], %s389
        %p391 = pneg %p49
        %p392 = pneg %p46
        %p393 = pneg %p70
        %p394 = pneg %p67
        %p395 = pneg %p91
        %p396 = pneg %p88
        %p397 = pneg %p112
        %p398 = pneg %p109
        %p399 = pneg %p133
        %p400 = pneg %p130
        %p401 = pneg %p154
        %p402 = pneg %p151
        %p403 = pneg %p175
        %p404 = pneg %p172
        %p405 = pneg %p196
        %p406 = pneg %p193
        %p407 = pneg %p217
        %p408 = pneg %p214
        %p409 = pneg %p243
        %p410 = pneg %p240
        %s411 = sand.u32 %s230, 1
        %s412 = scalar_lea.sflag [#allocation4], %s411
        %s413 = sand.u32 %s230, 1
        %s414 = smul.addr %s413, 8
        %s415 = scalar_lea.vmem [#allocation11], %s414
        %v417 = vld [vmem:[%s360] sm:$0xff]
        %v418 = vpack.c.bf16 %v417, %v417
        %v419 = vld [vmem:[#allocation5] sm:$0xf]
        %v420 = vld [vmem:[#allocation5 + $0x4] sm:$0xf]
        %v421 = vld [vmem:[#allocation5 + $0x8] sm:$0xf]
        %v422 = vld [vmem:[#allocation5 + $0xc] sm:$0xf]
        %v423 = vld [vmem:[%s2] sm:$0x1]
        %v425 = vperm.slane %v423, 0
        %v431 = vunpack.c.l.b16 %v419
        %v432 = vunpack.c.l.b16 %v420
        %v433 = vunpack.c.l.b16 %v421
        %v434 = vunpack.c.l.b16 %v422
        %v435 = vpack.c.b16 %v432, %v431
        %v436 = vpack.c.b16 %v434, %v433
        %vm439 = vcmask 261120
        %v441 = vsel %vm439, %v418, 0
        %443 = vmatpush.bf16.msra.mxu0 0
        %444 = vmatpush.bf16.msra.mxu0 0
        %445 = vmatpush.bf16.msra.mxu0 0
        %446 = vmatpush.bf16.msra.mxu0 0
        %447 = vmatpush.bf16.msra.mxu0 0
        %448 = vmatpush.bf16.msra.mxu0 0
        %449 = vmatpush.bf16.msra.mxu0 %v436
        %450 = vmatpush.bf16.msra.mxu0 %v435
        %451 = vmatmul.bf16.gmra.mxu0 %v441
        %v452 = vpop.f32.mrf.mxu0
        %v453 = vadd.f32 %v425, %v452
        %v454 = vpop.f32.mrf.mxu0
        %455 = vdwg.mxu0
        %v456 = vmax.f32 %v453, 0.0
        %v457 = vpack.c.bf16 %v456, %v456
        %v458 = vld [vmem:[#allocation7] sm:$0xf]
        %v459 = vld [vmem:[#allocation7 + $0x4] sm:$0xf]
        %v460 = vld [vmem:[#allocation7 + $0x8] sm:$0xf]
        %v461 = vld [vmem:[#allocation7 + $0xc] sm:$0xf]
        %v462 = vld [vmem:[%s4] sm:$0x1]
        %v464 = vperm.slane %v462, 0
        %v470 = vunpack.c.l.b16 %v458
        %v471 = vunpack.c.l.b16 %v459
        %v472 = vunpack.c.l.b16 %v460
        %v473 = vunpack.c.l.b16 %v461
        %v474 = vpack.c.b16 %v471, %v470
        %v475 = vpack.c.b16 %v473, %v472
        %v479 = vsel %vm439, %v457, 0
        %481 = vmatpush.bf16.msra.mxu0 0
        %482 = vmatpush.bf16.msra.mxu0 0
        %483 = vmatpush.bf16.msra.mxu0 0
        %484 = vmatpush.bf16.msra.mxu0 0
        %485 = vmatpush.bf16.msra.mxu0 0
        %486 = vmatpush.bf16.msra.mxu0 0
        %487 = vmatpush.bf16.msra.mxu0 %v475
        %488 = vmatpush.bf16.msra.mxu0 %v474
        %489 = vmatmul.bf16.gmra.mxu0 %v479
        %v490 = vpop.f32.mrf.mxu0
        %v491 = vadd.f32 %v464, %v490
        %v492 = vpop.f32.mrf.mxu0
        %493 = vdwg.mxu0
        %v494 = vmax.f32 %v491, 0.0
        %v495 = vpack.c.bf16 %v494, %v494
        %v496 = vld [vmem:[#allocation8] sm:$0xf]
        %v497 = vld [vmem:[#allocation8 + $0x4] sm:$0xf]
        %v498 = vld [vmem:[#allocation8 + $0x8] sm:$0xf]
        %v499 = vld [vmem:[#allocation8 + $0xc] sm:$0xf]
        %v500 = vld [vmem:[%s6] sm:$0x1]
        %v502 = vperm.slane %v500, 0
        %v508 = vunpack.c.l.b16 %v496
        %v509 = vunpack.c.l.b16 %v497
        %v510 = vunpack.c.l.b16 %v498
        %v511 = vunpack.c.l.b16 %v499
        %v512 = vpack.c.b16 %v509, %v508
        %v513 = vpack.c.b16 %v511, %v510
        %v517 = vsel %vm439, %v495, 0
        %519 = vmatpush.bf16.msra.mxu0 0
        %520 = vmatpush.bf16.msra.mxu0 0
        %521 = vmatpush.bf16.msra.mxu0 0
        %522 = vmatpush.bf16.msra.mxu0 0
        %523 = vmatpush.bf16.msra.mxu0 0
        %524 = vmatpush.bf16.msra.mxu0 0
        %525 = vmatpush.bf16.msra.mxu0 %v513
        %526 = vmatpush.bf16.msra.mxu0 %v512
        %527 = vmatmul.bf16.gmra.mxu0 %v517
        %v528 = vpop.f32.mrf.mxu0
        %v529 = vadd.f32 %v502, %v528
        %v530 = vpop.f32.mrf.mxu0
        %531 = vdwg.mxu0
        %v532 = vadd.f32 %v529, %v417
        %v533 = vpack.c.bf16 %v532, %v532
        %v534 = vld [vmem:[#allocation10] sm:$0xf]
        %v535 = vld [vmem:[#allocation10 + $0x4] sm:$0xf]
        %v536 = vld [vmem:[#allocation10 + $0x8] sm:$0xf]
        %v537 = vld [vmem:[#allocation10 + $0xc] sm:$0xf]
        %v538 = vld [vmem:[%s8] sm:$0x1]
        %v540 = vperm.slane %v538, 0
        %v546 = vunpack.c.l.b16 %v534
        %v547 = vunpack.c.l.b16 %v535
        %v548 = vunpack.c.l.b16 %v536
        %v549 = vunpack.c.l.b16 %v537
        %v550 = vpack.c.b16 %v547, %v546
        %v551 = vpack.c.b16 %v549, %v548
        %v555 = vsel %vm439, %v533, 0
        %557 = vmatpush.bf16.msra.mxu0 0
        %558 = vmatpush.bf16.msra.mxu0 0
        %559 = vmatpush.bf16.msra.mxu0 0
        %560 = vmatpush.bf16.msra.mxu0 0
        %561 = vmatpush.bf16.msra.mxu0 0
        %562 = vmatpush.bf16.msra.mxu0 0
        %563 = vmatpush.bf16.msra.mxu0 %v551
        %564 = vmatpush.bf16.msra.mxu0 %v550
        %565 = vmatmul.bf16.gmra.mxu0 %v555
        %v566 = vpop.f32.mrf.mxu0
        %v567 = vadd.f32 %v540, %v566
        %v568 = vpop.f32.mrf.mxu0
        %569 = vdwg.mxu0
        %570 = vst [vmem:[%s415] sm:$0xff] %v567
        %s571 = sand.u32 %s230, 1
        %s572 = scalar_lea.sflag [#allocation4], %s571
        %s573 = sand.u32 %s230, 1
        %s574 = smul.addr %s573, 8
        %s575 = scalar_lea.vmem [#allocation11], %s574
        // Predicated region
        $region77: #{tpu_custom_call.1} parent=55 // pred_check
          %p576 = pneg %p240
        $region78: #{tpu_custom_call.1} parent=55 // pred_check_branch
          %578 = sbr.rel (%p576) target = $region80
        $region79: #{tpu_custom_call.1} parent=55 // pred_region
          %580 = vsyncadd %s572, 0
          %s581 = smul.addr %s28, 8
          %s582 = scalar_lea.hbm %s9, %s581
          %s584 = sshll.u32 %s575, 4
          %s585 = int_to_ptr.vmem [resolvable:$true] %s584
          %s586 = sshll.u32 %s582, 4
          %s587 = int_to_ptr.hbm [resolvable:$true] %s586
          %589 = dma.vmem_to_hbm [thread:$0]  %s585, 128, %s587, %s572
        $region80: #{tpu_custom_call.1} parent=55 // pred_fallthru
          _
      $region56: #{tpu_custom_call.1} parent=5 // pred_fallthru
        _
      %p590 = scmp.le.s32.totalorder 2, %s23
      // Predicated region
      $region81: #{tpu_custom_call.1} parent=5 // pred_check
        %p591 = pneg %p590
      $region82: #{tpu_custom_call.1} parent=5 // pred_check_branch
        %593 = sbr.rel (%p591) target = $region84
      $region83: #{tpu_custom_call.1} parent=5 // pred_region
        %s594 = ssub.s32 %s23, 2
        // Predicated region
        $region85: #{tpu_custom_call.1} parent=83 // pred_check
          %p595 = pneg %p246
        $region86: #{tpu_custom_call.1} parent=83 // pred_check_branch
          %597 = sbr.rel (%p595) target = $region88
        $region87: #{tpu_custom_call.1} parent=83 // pred_region
          %s598 = sand.u32 %s231, 1
          %s599 = scalar_lea.sflag [#allocation4], %s598
          %s600 = sand.u32 %s231, 1
          %s601 = smul.addr %s600, 8
          %s602 = scalar_lea.vmem [#allocation11], %s601
          %604 = dma.done %s599, 128
        $region88: #{tpu_custom_call.1} parent=83 // pred_fallthru
          _
      $region84: #{tpu_custom_call.1} parent=5 // pred_fallthru
        _
    $region6: #{tpu_custom_call.1} parent=1 // loop_footer
      %s27 = sadd.s32 1, %s23
    $region7: #{tpu_custom_call.1} parent=1 // loop_footer_branch
      %22 = sbr.rel target = $region3
    $region8: #{tpu_custom_call.1} parent=1 // loop_exit
      _
    %605 = vsyncpa [#allocation3], 1
    %s606 = scalar_lea.sflag [#allocation3], 1
    %607 = vsyncpa %s606, 1
    %608 = vsyncpa [#allocation6], 1
    %609 = vsyncpa [#allocation9], 1
    %610 = vsyncpa [#allocation4], 1
    %s611 = scalar_lea.sflag [#allocation4], 1
    %612 = vsyncpa %s611, 1

</llo_original>
